<compile_context>
chip_gen: v5e
topology: v5e:2x2
jax: 0.10.0
libtpu: 0.0.40
codegen_flags: <defaults>
</compile_context>

<pallas_src>
import numpy as np
import jax
import jax.numpy as jnp
from jax.experimental import pallas as pl
from jax.experimental.pallas import tpu as pltpu

# ----------------------------------------------------------------------------
# Model hyper-parameters (the PyTorch module defaults)
# ----------------------------------------------------------------------------
IN_CH = 4              # in_channel_num_of_nucleotides
K = 4                  # kernel_size_k_mer_motif
DNN = 512              # dnn_size
SEQ = 64               # seq_len
DBL = 2 * IN_CH        # double_features
POOL = 2
NEW_SEQ = SEQ // POOL
BN_EPS = 1e-5
PADW = 4               # zero margin (lanes) around the sequence buffer


# ----------------------------------------------------------------------------
# Pallas kernel: entire forward pass, fully VMEM-resident
# ----------------------------------------------------------------------------
def cnn1dv2_kernel(x_ref, m_ref,
                   w0_ref, b0_ref, g0_ref, be0_ref,
                   w1_ref, b1_ref, g1_ref, be1_ref,
                   w2_ref, b2_ref, g2_ref, be2_ref,
                   gd_ref, bd_ref, wo_ref, bo_ref,
                   out_ref,
                   pad_ref, stack_ref, flat_ref):
  f32 = jnp.float32
  NL = x_ref.shape[1]          # N * SEQ (examples packed along lanes)
  n_batch = NL // SEQ

  # Zero the padded sequence buffer once: its margins provide the 'same'
  # conv zero padding and the pooling edge, so shifts are just offset loads.
  pad_ref[...] = jnp.zeros(pad_ref.shape, f32)

  def conv_relu_bn(h, cin, w_ref, b_ref, g_ref, be_ref):
    # h: (cin, NL) f32 -> (cout, NL) f32
    pad_ref[0:cin, PADW:PADW + NL] = h
    # im2col: K shifted copies stacked on sublanes; masks zero the positions
    # where a shift crosses an example boundary (asymmetric pad left=1/right=2).
    for j in range(K):               # static unroll over kernel taps
      off = j - 1
      piece = pad_ref[0:cin, PADW + off:PADW + off + NL] * m_ref[j]
      stack_ref[j * cin:(j + 1) * cin, :] = piece
    stack = stack_ref[0:K * cin, :]
    # Single matmul per conv layer: (cout, K*cin) @ (K*cin, NL).
    y = jnp.dot(w_ref[...], stack, preferred_element_type=f32) + b_ref[...]
    y = jnp.maximum(y, 0.0)          # ReLU
    # BatchNorm1d (training): per-channel stats over (batch, seq) = lanes.
    mean = jnp.mean(y, axis=1, keepdims=True)
    var = jnp.mean(y * y, axis=1, keepdims=True) - mean * mean   # biased var
    return (y - mean) * jax.lax.rsqrt(var + BN_EPS) * g_ref[...] + be_ref[...]

  h = conv_relu_bn(x_ref[...], IN_CH, w0_ref, b0_ref, g0_ref, be0_ref)  # (4, NL)
  h = conv_relu_bn(h, IN_CH, w1_ref, b1_ref, g1_ref, be1_ref)           # (8, NL)
  h = conv_relu_bn(h, DBL, w2_ref, b2_ref, g2_ref, be2_ref)             # (8, NL)

  # MaxPool1d(kernel=2, stride=2): only even sequence positions are consumed
  # downstream (odd rows of gd_ref are zero), so max(h[p], h[p+1]) everywhere
  # via a +1 shifted load is sufficient — no MXU, no selection matrices.
  pad_ref[0:DBL, PADW:PADW + NL] = h
  maxfull = jnp.maximum(h, pad_ref[0:DBL, PADW + 1:PADW + 1 + NL])      # (8, NL)

  # Flatten (channel-major per example, PyTorch order) into a lane-dense
  # (N, DBL*SEQ) tile via cheap static sub-stores, then ONE dense matmul.
  for c in range(DBL):
    for n in range(n_batch):
      flat_ref[n:n + 1, c * SEQ:(c + 1) * SEQ] = (
          maxfull[c:c + 1, n * SEQ:(n + 1) * SEQ])

  flat = flat_ref[...].astype(jnp.bfloat16)          # bf16 operands, f32 acc
  dnn = jnp.dot(flat, gd_ref[...], preferred_element_type=f32) + bd_ref[...]
  dnn = jnp.maximum(dnn, 0.0)                        # (N, DNN)

  # TODO(synk): nn.Dropout(p=0.2) in training mode is stochastic; implemented
  # as identity (eval semantics) since PyTorch RNG cannot be reproduced.

  # Final Linear (DNN -> 1): VPU multiply + lane reduction (no 1-lane matmul).
  out_ref[...] = jnp.sum(dnn * wo_ref[...], axis=1, keepdims=True) + bo_ref[...]


# ----------------------------------------------------------------------------
# Parameter init (deterministic, in-script) in PyTorch layout
# ----------------------------------------------------------------------------
def init_params(key):
  ks = jax.random.split(key, 14)

  def w(k, shape, scale):
    return jax.random.normal(k, shape, jnp.float32) * scale

  p = {}
  p["W0"] = w(ks[0], (IN_CH, IN_CH, K), 0.3)
  p["b0"] = w(ks[1], (IN_CH,), 0.1)
  p["g0"] = 1.0 + w(ks[2], (IN_CH,), 0.1)
  p["be0"] = w(ks[3], (IN_CH,), 0.1)
  p["W1"] = w(ks[4], (DBL, IN_CH, K), 0.3)
  p["b1"] = w(ks[5], (DBL,), 0.1)
  p["g1"] = 1.0 + w(ks[6], (DBL,), 0.1)
  p["be1"] = w(ks[7], (DBL,), 0.1)
  p["W2"] = w(ks[8], (DBL, DBL, K), 0.3)
  p["b2"] = w(ks[9], (DBL,), 0.1)
  p["g2"] = 1.0 + w(ks[10], (DBL,), 0.1)
  p["be2"] = w(ks[11], (DBL,), 0.1)
  p["Wd"] = w(ks[12], (DNN, DBL * NEW_SEQ), 0.05)
  kd1, kd2, kd3 = jax.random.split(ks[13], 3)
  p["bd"] = w(kd1, (DNN,), 0.05)
  p["Wo"] = w(kd2, (1, DNN), 0.05)
  p["bo"] = w(kd3, (1,), 0.05)
  return p


def quantize_for_kernel(p):
  # The dense weight is stored bf16 in the kernel; use the same effective
  # values in the reference so the self-check only measures kernel error.
  q = dict(p)
  q["Wd"] = p["Wd"].astype(jnp.bfloat16).astype(jnp.float32)
  return q


# ----------------------------------------------------------------------------
# Glue: pack weights for the kernel (all O(1) or O(N) in batch size)
# ----------------------------------------------------------------------------
def pack_inputs(p, N):
  NL = N * SEQ

  # Boundary masks: 1 where the shifted position stays inside its own example.
  l = np.arange(NL) % SEQ
  masks = np.zeros((K, 1, NL), np.float32)
  for j in range(K):
    off = j - 1
    masks[j, 0] = ((l + off >= 0) & (l + off < SEQ)).astype(np.float32)

  def wcat(W):  # (Cout, Cin, K) -> (Cout, K*Cin), matching stack row order
    W = np.asarray(W, np.float32)
    return jnp.asarray(W.transpose(0, 2, 1).reshape(W.shape[0], -1))

  def col(v):   # (C,) -> (C, 1)
    return jnp.asarray(np.asarray(v, np.float32).reshape(-1, 1))

  # Fused MaxPool-selection + Flatten + Linear weight:
  # G[c*SEQ + l, d] = Wd[d, c*NEW_SEQ + l//2] for even l, 0 for odd l.
  Wd = np.asarray(p["Wd"], np.float32)                    # (DNN, DBL*NEW_SEQ)
  G = np.zeros((DBL * SEQ, DNN), np.float32)
  for c in range(DBL):
    G[c * SEQ:(c + 1) * SEQ:2, :] = Wd[:, c * NEW_SEQ:(c + 1) * NEW_SEQ].T

  return (
      jnp.asarray(masks),
      wcat(p["W0"]), col(p["b0"]), col(p["g0"]), col(p["be0"]),
      wcat(p["W1"]), col(p["b1"]), col(p["g1"]), col(p["be1"]),
      wcat(p["W2"]), col(p["b2"]), col(p["g2"]), col(p["be2"]),
      jnp.asarray(G, jnp.bfloat16),
      jnp.asarray(np.asarray(p["bd"], np.float32).reshape(1, DNN)),
      jnp.asarray(np.asarray(p["Wo"], np.float32).reshape(1, DNN)),
      jnp.asarray(np.asarray(p["bo"], np.float32).reshape(1, 1)),
  )


def forward_pallas(x, packed):
  N = x.shape[0]
  # (N, C, SEQ) -> (C, N*SEQ): channels on sublanes, examples packed in lanes.
  x2d = jnp.transpose(x, (1, 0, 2)).reshape(IN_CH, N * SEQ).astype(jnp.float32)
  all_in = (x2d,) + packed
  return pl.pallas_call(
      cnn1dv2_kernel,
      out_shape=jax.ShapeDtypeStruct((N, 1), jnp.float32),
      in_specs=[pl.BlockSpec(memory_space=pltpu.MemorySpace.VMEM)] * len(all_in),
      out_specs=pl.BlockSpec(memory_space=pltpu.MemorySpace.VMEM),
      scratch_shapes=[
          pltpu.VMEM((DBL, N * SEQ + 2 * PADW), jnp.float32),   # padded seq buf
          pltpu.VMEM((K * DBL, N * SEQ), jnp.float32),          # im2col stack
          pltpu.VMEM((N, DBL * SEQ), jnp.float32),              # flattened acts
      ],
  )(*all_in)


# ----------------------------------------------------------------------------
# Pure-JAX reference (mirrors PyTorch forward exactly) for validation
# ----------------------------------------------------------------------------
def forward_reference(x, p):
  hi = jax.lax.Precision.HIGHEST

  def conv_same(h, W, b):
    y = jax.lax.conv_general_dilated(
        h, W, window_strides=(1,), padding=[(1, 2)],
        dimension_numbers=("NCH", "OIH", "NCH"), precision=hi)
    return y + b[None, :, None]

  def bn(h, g, be):
    mean = jnp.mean(h, axis=(0, 2), keepdims=True)
    var = jnp.mean(h * h, axis=(0, 2), keepdims=True) - mean * mean
    return (h - mean) * jax.lax.rsqrt(var + BN_EPS) * g[None, :, None] + be[None, :, None]

  relu = lambda v: jnp.maximum(v, 0.0)
  h = bn(relu(conv_same(x, p["W0"], p["b0"])), p["g0"], p["be0"])
  h = bn(relu(conv_same(h, p["W1"], p["b1"])), p["g1"], p["be1"])
  h = bn(relu(conv_same(h, p["W2"], p["b2"])), p["g2"], p["be2"])
  N = h.shape[0]
  h = h.reshape(N, DBL, NEW_SEQ, POOL).max(axis=-1)        # MaxPool1d(2,2)
  h = h.reshape(N, DBL * NEW_SEQ)                          # Flatten
  h = relu(jnp.dot(h, p["Wd"].T, precision=hi) + p["bd"])  # Linear + ReLU
  # dropout = identity (eval); sigmoid not applied in forward
  return jnp.dot(h, p["Wo"].T, precision=hi) + p["bo"]


if __name__ == "__main__":
  N = 2
  key = jax.random.PRNGKey(0)
  kx, kp = jax.random.split(key)
  x = jax.random.normal(kx, (N, IN_CH, SEQ), jnp.float32)   # NCL, like PyTorch
  params = quantize_for_kernel(init_params(kp))
  packed = pack_inputs(params, N)

  y = forward_pallas(x, packed)
  y = jax.block_until_ready(y)

  y_ref = forward_reference(x, params)
  assert y.shape == (N, 1)
  # Tolerance covers the bf16 dense matmul operands (weights are shared
  # bit-exactly between kernel and reference).
  np.testing.assert_allclose(np.asarray(y), np.asarray(y_ref), rtol=2e-2, atol=2e-2)
  print("KERNEL_OK")
</pallas_src>

<mosaic_0001>
module attributes {stable_mosaic.version = 11 : i64} {
  func.func @cnn1dv2_kernel(%arg0: memref<4x128xf32, #tpu.memory_space<vmem>>, %arg1: memref<4x1x128xf32, #tpu.memory_space<vmem>>, %arg2: memref<4x16xf32, #tpu.memory_space<vmem>>, %arg3: memref<4x1xf32, #tpu.memory_space<vmem>>, %arg4: memref<4x1xf32, #tpu.memory_space<vmem>>, %arg5: memref<4x1xf32, #tpu.memory_space<vmem>>, %arg6: memref<8x16xf32, #tpu.memory_space<vmem>>, %arg7: memref<8x1xf32, #tpu.memory_space<vmem>>, %arg8: memref<8x1xf32, #tpu.memory_space<vmem>>, %arg9: memref<8x1xf32, #tpu.memory_space<vmem>>, %arg10: memref<8x32xf32, #tpu.memory_space<vmem>>, %arg11: memref<8x1xf32, #tpu.memory_space<vmem>>, %arg12: memref<8x1xf32, #tpu.memory_space<vmem>>, %arg13: memref<8x1xf32, #tpu.memory_space<vmem>>, %arg14: memref<512x512xbf16, #tpu.memory_space<vmem>>, %arg15: memref<1x512xf32, #tpu.memory_space<vmem>>, %arg16: memref<1x512xf32, #tpu.memory_space<vmem>>, %arg17: memref<1x1xf32, #tpu.memory_space<vmem>>, %arg18: memref<2x1xf32, #tpu.memory_space<vmem>>, %arg19: memref<8x136xf32, #tpu.memory_space<vmem>>, %arg20: memref<32x128xf32, #tpu.memory_space<vmem>>, %arg21: memref<2x512xf32, #tpu.memory_space<vmem>>) attributes {dimension_semantics = [], scalar_prefetch = 0 : i64, scratch_operands = 3 : i64, tpu.core_type = #tpu.core_type<tc>} {
    %cst = arith.constant 0.000000e+00 : f32
    %0 = vector.broadcast %cst : f32 to vector<8x136xf32>
    %c0 = arith.constant 0 : index
    %c0_0 = arith.constant 0 : index
    %1 = vector.load %arg19[%c0, %c0_0] : memref<8x136xf32, #tpu.memory_space<vmem>>, vector<8x136xf32>
    tpu.vector_store %arg19[%c0, %c0_0], %0 {strides = array<i32>} : memref<8x136xf32, #tpu.memory_space<vmem>>, vector<8x136xf32>,
    %c0_1 = arith.constant 0 : index
    %c0_2 = arith.constant 0 : index
    %2 = vector.load %arg0[%c0_1, %c0_2] : memref<4x128xf32, #tpu.memory_space<vmem>>, vector<4x128xf32>
    %c0_3 = arith.constant 0 : index
    %c4 = arith.constant 4 : index
    %3 = vector.load %arg19[%c0_3, %c4] : memref<8x136xf32, #tpu.memory_space<vmem>>, vector<4x128xf32>
    tpu.vector_store %arg19[%c0_3, %c4], %2 {strides = array<i32>} : memref<8x136xf32, #tpu.memory_space<vmem>>, vector<4x128xf32>,
    %c0_4 = arith.constant 0 : index
    %c3 = arith.constant 3 : index
    %4 = vector.load %arg19[%c0_4, %c3] : memref<8x136xf32, #tpu.memory_space<vmem>>, vector<4x128xf32>
    %c0_5 = arith.constant 0 : index
    %c0_6 = arith.constant 0 : index
    %c0_7 = arith.constant 0 : index
    %5 = vector.load %arg1[%c0_5, %c0_6, %c0_7] : memref<4x1x128xf32, #tpu.memory_space<vmem>>, vector<1x1x128xf32>
    %6 = vector.shape_cast %5 : vector<1x1x128xf32> to vector<1x128xf32>
    %7 = vector.broadcast %6 : vector<1x128xf32> to vector<4x128xf32>
    %8 = arith.mulf %4, %7 : vector<4x128xf32>
    %c0_8 = arith.constant 0 : index
    %c0_9 = arith.constant 0 : index
    %9 = vector.load %arg20[%c0_8, %c0_9] : memref<32x128xf32, #tpu.memory_space<vmem>>, vector<4x128xf32>
    tpu.vector_store %arg20[%c0_8, %c0_9], %8 {strides = array<i32>} : memref<32x128xf32, #tpu.memory_space<vmem>>, vector<4x128xf32>,
    %c0_10 = arith.constant 0 : index
    %c4_11 = arith.constant 4 : index
    %10 = vector.load %arg19[%c0_10, %c4_11] : memref<8x136xf32, #tpu.memory_space<vmem>>, vector<4x128xf32>
    %c1 = arith.constant 1 : index
    %c0_12 = arith.constant 0 : index
    %c0_13 = arith.constant 0 : index
    %11 = vector.load %arg1[%c1, %c0_12, %c0_13] : memref<4x1x128xf32, #tpu.memory_space<vmem>>, vector<1x1x128xf32>
    %12 = vector.shape_cast %11 : vector<1x1x128xf32> to vector<1x128xf32>
    %13 = vector.broadcast %12 : vector<1x128xf32> to vector<4x128xf32>
    %14 = arith.mulf %10, %13 : vector<4x128xf32>
    %c4_14 = arith.constant 4 : index
    %c0_15 = arith.constant 0 : index
    %15 = vector.load %arg20[%c4_14, %c0_15] : memref<32x128xf32, #tpu.memory_space<vmem>>, vector<4x128xf32>
    tpu.vector_store %arg20[%c4_14, %c0_15], %14 {strides = array<i32>} : memref<32x128xf32, #tpu.memory_space<vmem>>, vector<4x128xf32>,
    %c0_16 = arith.constant 0 : index
    %c5 = arith.constant 5 : index
    %16 = vector.load %arg19[%c0_16, %c5] : memref<8x136xf32, #tpu.memory_space<vmem>>, vector<4x128xf32>
    %c2 = arith.constant 2 : index
    %c0_17 = arith.constant 0 : index
    %c0_18 = arith.constant 0 : index
    %17 = vector.load %arg1[%c2, %c0_17, %c0_18] : memref<4x1x128xf32, #tpu.memory_space<vmem>>, vector<1x1x128xf32>
    %18 = vector.shape_cast %17 : vector<1x1x128xf32> to vector<1x128xf32>
    %19 = vector.broadcast %18 : vector<1x128xf32> to vector<4x128xf32>
    %20 = arith.mulf %16, %19 : vector<4x128xf32>
    %c8 = arith.constant 8 : index
    %c0_19 = arith.constant 0 : index
    %21 = vector.load %arg20[%c8, %c0_19] : memref<32x128xf32, #tpu.memory_space<vmem>>, vector<4x128xf32>
    tpu.vector_store %arg20[%c8, %c0_19], %20 {strides = array<i32>} : memref<32x128xf32, #tpu.memory_space<vmem>>, vector<4x128xf32>,
    %c0_20 = arith.constant 0 : index
    %c6 = arith.constant 6 : index
    %22 = vector.load %arg19[%c0_20, %c6] : memref<8x136xf32, #tpu.memory_space<vmem>>, vector<4x128xf32>
    %c3_21 = arith.constant 3 : index
    %c0_22 = arith.constant 0 : index
    %c0_23 = arith.constant 0 : index
    %23 = vector.load %arg1[%c3_21, %c0_22, %c0_23] : memref<4x1x128xf32, #tpu.memory_space<vmem>>, vector<1x1x128xf32>
    %24 = vector.shape_cast %23 : vector<1x1x128xf32> to vector<1x128xf32>
    %25 = vector.broadcast %24 : vector<1x128xf32> to vector<4x128xf32>
    %26 = arith.mulf %22, %25 : vector<4x128xf32>
    %c12 = arith.constant 12 : index
    %c0_24 = arith.constant 0 : index
    %27 = vector.load %arg20[%c12, %c0_24] : memref<32x128xf32, #tpu.memory_space<vmem>>, vector<4x128xf32>
    tpu.vector_store %arg20[%c12, %c0_24], %26 {strides = array<i32>} : memref<32x128xf32, #tpu.memory_space<vmem>>, vector<4x128xf32>,
    %c0_25 = arith.constant 0 : index
    %c0_26 = arith.constant 0 : index
    %28 = vector.load %arg20[%c0_25, %c0_26] : memref<32x128xf32, #tpu.memory_space<vmem>>, vector<16x128xf32>
    %c0_27 = arith.constant 0 : index
    %c0_28 = arith.constant 0 : index
    %29 = vector.load %arg2[%c0_27, %c0_28] : memref<4x16xf32, #tpu.memory_space<vmem>>, vector<4x16xf32>
    %cst_29 = arith.constant dense<0.000000e+00> : vector<4x128xf32>
    %30 = tpu.matmul %29, %28, %cst_29 {dimension_numbers = #tpu.dot_dimension_numbers<[1], [0], [0], [1], [0, 0, 1, 1], [], []>} : vector<4x16xf32>, vector<16x128xf32>, vector<4x128xf32> -> vector<4x128xf32>
    %c0_30 = arith.constant 0 : index
    %c0_31 = arith.constant 0 : index
    %31 = vector.load %arg3[%c0_30, %c0_31] : memref<4x1xf32, #tpu.memory_space<vmem>>, vector<4x1xf32>
    %32 = vector.broadcast %31 : vector<4x1xf32> to vector<4x128xf32>
    %33 = arith.addf %30, %32 : vector<4x128xf32>
    %cst_32 = arith.constant 0.000000e+00 : f32
    %34 = vector.broadcast %cst_32 : f32 to vector<4x128xf32>
    %35 = arith.maximumf %33, %34 : vector<4x128xf32>
    %cst_33 = arith.constant dense<0.000000e+00> : vector<4xf32>
    %36 = vector.multi_reduction <add>, %35, %cst_33 [1] : vector<4x128xf32> to vector<4xf32>
    %37 = vector.shape_cast %36 : vector<4xf32> to vector<4x1xf32>
    %cst_34 = arith.constant 1.280000e+02 : f32
    %38 = vector.broadcast %cst_34 : f32 to vector<4x1xf32>
    %39 = arith.divf %37, %38 : vector<4x1xf32>
    %40 = arith.mulf %35, %35 : vector<4x128xf32>
    %cst_35 = arith.constant dense<0.000000e+00> : vector<4xf32>
    %41 = vector.multi_reduction <add>, %40, %cst_35 [1] : vector<4x128xf32> to vector<4xf32>
    %42 = vector.shape_cast %41 : vector<4xf32> to vector<4x1xf32>
    %cst_36 = arith.constant 1.280000e+02 : f32
    %43 = vector.broadcast %cst_36 : f32 to vector<4x1xf32>
    %44 = arith.divf %42, %43 : vector<4x1xf32>
    %45 = arith.mulf %39, %39 : vector<4x1xf32>
    %46 = arith.subf %44, %45 : vector<4x1xf32>
    %47 = vector.broadcast %39 : vector<4x1xf32> to vector<4x128xf32>
    %48 = arith.subf %35, %47 : vector<4x128xf32>
    %cst_37 = arith.constant 9.99999974E-6 : f32
    %49 = vector.broadcast %cst_37 : f32 to vector<4x1xf32>
    %50 = arith.addf %46, %49 : vector<4x1xf32>
    %51 = math.rsqrt %50 : vector<4x1xf32>
    %52 = vector.broadcast %51 : vector<4x1xf32> to vector<4x128xf32>
    %53 = arith.mulf %48, %52 : vector<4x128xf32>
    %c0_38 = arith.constant 0 : index
    %c0_39 = arith.constant 0 : index
    %54 = vector.load %arg4[%c0_38, %c0_39] : memref<4x1xf32, #tpu.memory_space<vmem>>, vector<4x1xf32>
    %55 = vector.broadcast %54 : vector<4x1xf32> to vector<4x128xf32>
    %56 = arith.mulf %53, %55 : vector<4x128xf32>
    %c0_40 = arith.constant 0 : index
    %c0_41 = arith.constant 0 : index
    %57 = vector.load %arg5[%c0_40, %c0_41] : memref<4x1xf32, #tpu.memory_space<vmem>>, vector<4x1xf32>
    %58 = vector.broadcast %57 : vector<4x1xf32> to vector<4x128xf32>
    %59 = arith.addf %56, %58 : vector<4x128xf32>
    %c0_42 = arith.constant 0 : index
    %c4_43 = arith.constant 4 : index
    %60 = vector.load %arg19[%c0_42, %c4_43] : memref<8x136xf32, #tpu.memory_space<vmem>>, vector<4x128xf32>
    tpu.vector_store %arg19[%c0_42, %c4_43], %59 {strides = array<i32>} : memref<8x136xf32, #tpu.memory_space<vmem>>, vector<4x128xf32>,
    %c0_44 = arith.constant 0 : index
    %c3_45 = arith.constant 3 : index
    %61 = vector.load %arg19[%c0_44, %c3_45] : memref<8x136xf32, #tpu.memory_space<vmem>>, vector<4x128xf32>
    %c0_46 = arith.constant 0 : index
    %c0_47 = arith.constant 0 : index
    %c0_48 = arith.constant 0 : index
    %62 = vector.load %arg1[%c0_46, %c0_47, %c0_48] : memref<4x1x128xf32, #tpu.memory_space<vmem>>, vector<1x1x128xf32>
    %63 = vector.shape_cast %62 : vector<1x1x128xf32> to vector<1x128xf32>
    %64 = vector.broadcast %63 : vector<1x128xf32> to vector<4x128xf32>
    %65 = arith.mulf %61, %64 : vector<4x128xf32>
    %c0_49 = arith.constant 0 : index
    %c0_50 = arith.constant 0 : index
    %66 = vector.load %arg20[%c0_49, %c0_50] : memref<32x128xf32, #tpu.memory_space<vmem>>, vector<4x128xf32>
    tpu.vector_store %arg20[%c0_49, %c0_50], %65 {strides = array<i32>} : memref<32x128xf32, #tpu.memory_space<vmem>>, vector<4x128xf32>,
    %c0_51 = arith.constant 0 : index
    %c4_52 = arith.constant 4 : index
    %67 = vector.load %arg19[%c0_51, %c4_52] : memref<8x136xf32, #tpu.memory_space<vmem>>, vector<4x128xf32>
    %c1_53 = arith.constant 1 : index
    %c0_54 = arith.constant 0 : index
    %c0_55 = arith.constant 0 : index
    %68 = vector.load %arg1[%c1_53, %c0_54, %c0_55] : memref<4x1x128xf32, #tpu.memory_space<vmem>>, vector<1x1x128xf32>
    %69 = vector.shape_cast %68 : vector<1x1x128xf32> to vector<1x128xf32>
    %70 = vector.broadcast %69 : vector<1x128xf32> to vector<4x128xf32>
    %71 = arith.mulf %67, %70 : vector<4x128xf32>
    %c4_56 = arith.constant 4 : index
    %c0_57 = arith.constant 0 : index
    %72 = vector.load %arg20[%c4_56, %c0_57] : memref<32x128xf32, #tpu.memory_space<vmem>>, vector<4x128xf32>
    tpu.vector_store %arg20[%c4_56, %c0_57], %71 {strides = array<i32>} : memref<32x128xf32, #tpu.memory_space<vmem>>, vector<4x128xf32>,
    %c0_58 = arith.constant 0 : index
    %c5_59 = arith.constant 5 : index
    %73 = vector.load %arg19[%c0_58, %c5_59] : memref<8x136xf32, #tpu.memory_space<vmem>>, vector<4x128xf32>
    %c2_60 = arith.constant 2 : index
    %c0_61 = arith.constant 0 : index
    %c0_62 = arith.constant 0 : index
    %74 = vector.load %arg1[%c2_60, %c0_61, %c0_62] : memref<4x1x128xf32, #tpu.memory_space<vmem>>, vector<1x1x128xf32>
    %75 = vector.shape_cast %74 : vector<1x1x128xf32> to vector<1x128xf32>
    %76 = vector.broadcast %75 : vector<1x128xf32> to vector<4x128xf32>
    %77 = arith.mulf %73, %76 : vector<4x128xf32>
    %c8_63 = arith.constant 8 : index
    %c0_64 = arith.constant 0 : index
    %78 = vector.load %arg20[%c8_63, %c0_64] : memref<32x128xf32, #tpu.memory_space<vmem>>, vector<4x128xf32>
    tpu.vector_store %arg20[%c8_63, %c0_64], %77 {strides = array<i32>} : memref<32x128xf32, #tpu.memory_space<vmem>>, vector<4x128xf32>,
    %c0_65 = arith.constant 0 : index
    %c6_66 = arith.constant 6 : index
    %79 = vector.load %arg19[%c0_65, %c6_66] : memref<8x136xf32, #tpu.memory_space<vmem>>, vector<4x128xf32>
    %c3_67 = arith.constant 3 : index
    %c0_68 = arith.constant 0 : index
    %c0_69 = arith.constant 0 : index
    %80 = vector.load %arg1[%c3_67, %c0_68, %c0_69] : memref<4x1x128xf32, #tpu.memory_space<vmem>>, vector<1x1x128xf32>
    %81 = vector.shape_cast %80 : vector<1x1x128xf32> to vector<1x128xf32>
    %82 = vector.broadcast %81 : vector<1x128xf32> to vector<4x128xf32>
    %83 = arith.mulf %79, %82 : vector<4x128xf32>
    %c12_70 = arith.constant 12 : index
    %c0_71 = arith.constant 0 : index
    %84 = vector.load %arg20[%c12_70, %c0_71] : memref<32x128xf32, #tpu.memory_space<vmem>>, vector<4x128xf32>
    tpu.vector_store %arg20[%c12_70, %c0_71], %83 {strides = array<i32>} : memref<32x128xf32, #tpu.memory_space<vmem>>, vector<4x128xf32>,
    %c0_72 = arith.constant 0 : index
    %c0_73 = arith.constant 0 : index
    %85 = vector.load %arg20[%c0_72, %c0_73] : memref<32x128xf32, #tpu.memory_space<vmem>>, vector<16x128xf32>
    %c0_74 = arith.constant 0 : index
    %c0_75 = arith.constant 0 : index
    %86 = vector.load %arg6[%c0_74, %c0_75] : memref<8x16xf32, #tpu.memory_space<vmem>>, vector<8x16xf32>
    %cst_76 = arith.constant dense<0.000000e+00> : vector<8x128xf32>
    %87 = tpu.matmul %86, %85, %cst_76 {dimension_numbers = #tpu.dot_dimension_numbers<[1], [0], [0], [1], [0, 0, 1, 1], [], []>} : vector<8x16xf32>, vector<16x128xf32>, vector<8x128xf32> -> vector<8x128xf32>
    %c0_77 = arith.constant 0 : index
    %c0_78 = arith.constant 0 : index
    %88 = vector.load %arg7[%c0_77, %c0_78] : memref<8x1xf32, #tpu.memory_space<vmem>>, vector<8x1xf32>
    %89 = vector.broadcast %88 : vector<8x1xf32> to vector<8x128xf32>
    %90 = arith.addf %87, %89 : vector<8x128xf32>
    %cst_79 = arith.constant 0.000000e+00 : f32
    %91 = vector.broadcast %cst_79 : f32 to vector<8x128xf32>
    %92 = arith.maximumf %90, %91 : vector<8x128xf32>
    %cst_80 = arith.constant dense<0.000000e+00> : vector<8xf32>
    %93 = vector.multi_reduction <add>, %92, %cst_80 [1] : vector<8x128xf32> to vector<8xf32>
    %94 = vector.shape_cast %93 : vector<8xf32> to vector<8x1xf32>
    %cst_81 = arith.constant 1.280000e+02 : f32
    %95 = vector.broadcast %cst_81 : f32 to vector<8x1xf32>
    %96 = arith.divf %94, %95 : vector<8x1xf32>
    %97 = arith.mulf %92, %92 : vector<8x128xf32>
    %cst_82 = arith.constant dense<0.000000e+00> : vector<8xf32>
    %98 = vector.multi_reduction <add>, %97, %cst_82 [1] : vector<8x128xf32> to vector<8xf32>
    %99 = vector.shape_cast %98 : vector<8xf32> to vector<8x1xf32>
    %cst_83 = arith.constant 1.280000e+02 : f32
    %100 = vector.broadcast %cst_83 : f32 to vector<8x1xf32>
    %101 = arith.divf %99, %100 : vector<8x1xf32>
    %102 = arith.mulf %96, %96 : vector<8x1xf32>
    %103 = arith.subf %101, %102 : vector<8x1xf32>
    %104 = vector.broadcast %96 : vector<8x1xf32> to vector<8x128xf32>
    %105 = arith.subf %92, %104 : vector<8x128xf32>
    %cst_84 = arith.constant 9.99999974E-6 : f32
    %106 = vector.broadcast %cst_84 : f32 to vector<8x1xf32>
    %107 = arith.addf %103, %106 : vector<8x1xf32>
    %108 = math.rsqrt %107 : vector<8x1xf32>
    %109 = vector.broadcast %108 : vector<8x1xf32> to vector<8x128xf32>
    %110 = arith.mulf %105, %109 : vector<8x128xf32>
    %c0_85 = arith.constant 0 : index
    %c0_86 = arith.constant 0 : index
    %111 = vector.load %arg8[%c0_85, %c0_86] : memref<8x1xf32, #tpu.memory_space<vmem>>, vector<8x1xf32>
    %112 = vector.broadcast %111 : vector<8x1xf32> to vector<8x128xf32>
    %113 = arith.mulf %110, %112 : vector<8x128xf32>
    %c0_87 = arith.constant 0 : index
    %c0_88 = arith.constant 0 : index
    %114 = vector.load %arg9[%c0_87, %c0_88] : memref<8x1xf32, #tpu.memory_space<vmem>>, vector<8x1xf32>
    %115 = vector.broadcast %114 : vector<8x1xf32> to vector<8x128xf32>
    %116 = arith.addf %113, %115 : vector<8x128xf32>
    %c0_89 = arith.constant 0 : index
    %c4_90 = arith.constant 4 : index
    %117 = vector.load %arg19[%c0_89, %c4_90] : memref<8x136xf32, #tpu.memory_space<vmem>>, vector<8x128xf32>
    tpu.vector_store %arg19[%c0_89, %c4_90], %116 {strides = array<i32>} : memref<8x136xf32, #tpu.memory_space<vmem>>, vector<8x128xf32>,
    %c0_91 = arith.constant 0 : index
    %c3_92 = arith.constant 3 : index
    %118 = vector.load %arg19[%c0_91, %c3_92] : memref<8x136xf32, #tpu.memory_space<vmem>>, vector<8x128xf32>
    %c0_93 = arith.constant 0 : index
    %c0_94 = arith.constant 0 : index
    %c0_95 = arith.constant 0 : index
    %119 = vector.load %arg1[%c0_93, %c0_94, %c0_95] : memref<4x1x128xf32, #tpu.memory_space<vmem>>, vector<1x1x128xf32>
    %120 = vector.shape_cast %119 : vector<1x1x128xf32> to vector<1x128xf32>
    %121 = vector.broadcast %120 : vector<1x128xf32> to vector<8x128xf32>
    %122 = arith.mulf %118, %121 : vector<8x128xf32>
    %c0_96 = arith.constant 0 : index
    %c0_97 = arith.constant 0 : index
    %123 = vector.load %arg20[%c0_96, %c0_97] : memref<32x128xf32, #tpu.memory_space<vmem>>, vector<8x128xf32>
    tpu.vector_store %arg20[%c0_96, %c0_97], %122 {strides = array<i32>} : memref<32x128xf32, #tpu.memory_space<vmem>>, vector<8x128xf32>,
    %c0_98 = arith.constant 0 : index
    %c4_99 = arith.constant 4 : index
    %124 = vector.load %arg19[%c0_98, %c4_99] : memref<8x136xf32, #tpu.memory_space<vmem>>, vector<8x128xf32>
    %c1_100 = arith.constant 1 : index
    %c0_101 = arith.constant 0 : index
    %c0_102 = arith.constant 0 : index
    %125 = vector.load %arg1[%c1_100, %c0_101, %c0_102] : memref<4x1x128xf32, #tpu.memory_space<vmem>>, vector<1x1x128xf32>
    %126 = vector.shape_cast %125 : vector<1x1x128xf32> to vector<1x128xf32>
    %127 = vector.broadcast %126 : vector<1x128xf32> to vector<8x128xf32>
    %128 = arith.mulf %124, %127 : vector<8x128xf32>
    %c8_103 = arith.constant 8 : index
    %c0_104 = arith.constant 0 : index
    %129 = vector.load %arg20[%c8_103, %c0_104] : memref<32x128xf32, #tpu.memory_space<vmem>>, vector<8x128xf32>
    tpu.vector_store %arg20[%c8_103, %c0_104], %128 {strides = array<i32>} : memref<32x128xf32, #tpu.memory_space<vmem>>, vector<8x128xf32>,
    %c0_105 = arith.constant 0 : index
    %c5_106 = arith.constant 5 : index
    %130 = vector.load %arg19[%c0_105, %c5_106] : memref<8x136xf32, #tpu.memory_space<vmem>>, vector<8x128xf32>
    %c2_107 = arith.constant 2 : index
    %c0_108 = arith.constant 0 : index
    %c0_109 = arith.constant 0 : index
    %131 = vector.load %arg1[%c2_107, %c0_108, %c0_109] : memref<4x1x128xf32, #tpu.memory_space<vmem>>, vector<1x1x128xf32>
    %132 = vector.shape_cast %131 : vector<1x1x128xf32> to vector<1x128xf32>
    %133 = vector.broadcast %132 : vector<1x128xf32> to vector<8x128xf32>
    %134 = arith.mulf %130, %133 : vector<8x128xf32>
    %c16 = arith.constant 16 : index
    %c0_110 = arith.constant 0 : index
    %135 = vector.load %arg20[%c16, %c0_110] : memref<32x128xf32, #tpu.memory_space<vmem>>, vector<8x128xf32>
    tpu.vector_store %arg20[%c16, %c0_110], %134 {strides = array<i32>} : memref<32x128xf32, #tpu.memory_space<vmem>>, vector<8x128xf32>,
    %c0_111 = arith.constant 0 : index
    %c6_112 = arith.constant 6 : index
    %136 = vector.load %arg19[%c0_111, %c6_112] : memref<8x136xf32, #tpu.memory_space<vmem>>, vector<8x128xf32>
    %c3_113 = arith.constant 3 : index
    %c0_114 = arith.constant 0 : index
    %c0_115 = arith.constant 0 : index
    %137 = vector.load %arg1[%c3_113, %c0_114, %c0_115] : memref<4x1x128xf32, #tpu.memory_space<vmem>>, vector<1x1x128xf32>
    %138 = vector.shape_cast %137 : vector<1x1x128xf32> to vector<1x128xf32>
    %139 = vector.broadcast %138 : vector<1x128xf32> to vector<8x128xf32>
    %140 = arith.mulf %136, %139 : vector<8x128xf32>
    %c24 = arith.constant 24 : index
    %c0_116 = arith.constant 0 : index
    %141 = vector.load %arg20[%c24, %c0_116] : memref<32x128xf32, #tpu.memory_space<vmem>>, vector<8x128xf32>
    tpu.vector_store %arg20[%c24, %c0_116], %140 {strides = array<i32>} : memref<32x128xf32, #tpu.memory_space<vmem>>, vector<8x128xf32>,
    %c0_117 = arith.constant 0 : index
    %c0_118 = arith.constant 0 : index
    %142 = vector.load %arg20[%c0_117, %c0_118] : memref<32x128xf32, #tpu.memory_space<vmem>>, vector<32x128xf32>
    %c0_119 = arith.constant 0 : index
    %c0_120 = arith.constant 0 : index
    %143 = vector.load %arg10[%c0_119, %c0_120] : memref<8x32xf32, #tpu.memory_space<vmem>>, vector<8x32xf32>
    %cst_121 = arith.constant dense<0.000000e+00> : vector<8x128xf32>
    %144 = tpu.matmul %143, %142, %cst_121 {dimension_numbers = #tpu.dot_dimension_numbers<[1], [0], [0], [1], [0, 0, 1, 1], [], []>} : vector<8x32xf32>, vector<32x128xf32>, vector<8x128xf32> -> vector<8x128xf32>
    %c0_122 = arith.constant 0 : index
    %c0_123 = arith.constant 0 : index
    %145 = vector.load %arg11[%c0_122, %c0_123] : memref<8x1xf32, #tpu.memory_space<vmem>>, vector<8x1xf32>
    %146 = vector.broadcast %145 : vector<8x1xf32> to vector<8x128xf32>
    %147 = arith.addf %144, %146 : vector<8x128xf32>
    %cst_124 = arith.constant 0.000000e+00 : f32
    %148 = vector.broadcast %cst_124 : f32 to vector<8x128xf32>
    %149 = arith.maximumf %147, %148 : vector<8x128xf32>
    %cst_125 = arith.constant dense<0.000000e+00> : vector<8xf32>
    %150 = vector.multi_reduction <add>, %149, %cst_125 [1] : vector<8x128xf32> to vector<8xf32>
    %151 = vector.shape_cast %150 : vector<8xf32> to vector<8x1xf32>
    %cst_126 = arith.constant 1.280000e+02 : f32
    %152 = vector.broadcast %cst_126 : f32 to vector<8x1xf32>
    %153 = arith.divf %151, %152 : vector<8x1xf32>
    %154 = arith.mulf %149, %149 : vector<8x128xf32>
    %cst_127 = arith.constant dense<0.000000e+00> : vector<8xf32>
    %155 = vector.multi_reduction <add>, %154, %cst_127 [1] : vector<8x128xf32> to vector<8xf32>
    %156 = vector.shape_cast %155 : vector<8xf32> to vector<8x1xf32>
    %cst_128 = arith.constant 1.280000e+02 : f32
    %157 = vector.broadcast %cst_128 : f32 to vector<8x1xf32>
    %158 = arith.divf %156, %157 : vector<8x1xf32>
    %159 = arith.mulf %153, %153 : vector<8x1xf32>
    %160 = arith.subf %158, %159 : vector<8x1xf32>
    %161 = vector.broadcast %153 : vector<8x1xf32> to vector<8x128xf32>
    %162 = arith.subf %149, %161 : vector<8x128xf32>
    %cst_129 = arith.constant 9.99999974E-6 : f32
    %163 = vector.broadcast %cst_129 : f32 to vector<8x1xf32>
    %164 = arith.addf %160, %163 : vector<8x1xf32>
    %165 = math.rsqrt %164 : vector<8x1xf32>
    %166 = vector.broadcast %165 : vector<8x1xf32> to vector<8x128xf32>
    %167 = arith.mulf %162, %166 : vector<8x128xf32>
    %c0_130 = arith.constant 0 : index
    %c0_131 = arith.constant 0 : index
    %168 = vector.load %arg12[%c0_130, %c0_131] : memref<8x1xf32, #tpu.memory_space<vmem>>, vector<8x1xf32>
    %169 = vector.broadcast %168 : vector<8x1xf32> to vector<8x128xf32>
    %170 = arith.mulf %167, %169 : vector<8x128xf32>
    %c0_132 = arith.constant 0 : index
    %c0_133 = arith.constant 0 : index
    %171 = vector.load %arg13[%c0_132, %c0_133] : memref<8x1xf32, #tpu.memory_space<vmem>>, vector<8x1xf32>
    %172 = vector.broadcast %171 : vector<8x1xf32> to vector<8x128xf32>
    %173 = arith.addf %170, %172 : vector<8x128xf32>
    %c0_134 = arith.constant 0 : index
    %c4_135 = arith.constant 4 : index
    %174 = vector.load %arg19[%c0_134, %c4_135] : memref<8x136xf32, #tpu.memory_space<vmem>>, vector<8x128xf32>
    tpu.vector_store %arg19[%c0_134, %c4_135], %173 {strides = array<i32>} : memref<8x136xf32, #tpu.memory_space<vmem>>, vector<8x128xf32>,
    %c0_136 = arith.constant 0 : index
    %c5_137 = arith.constant 5 : index
    %175 = vector.load %arg19[%c0_136, %c5_137] : memref<8x136xf32, #tpu.memory_space<vmem>>, vector<8x128xf32>
    %176 = arith.maximumf %173, %175 : vector<8x128xf32>
    %177 = vector.extract_strided_slice %176 {offsets = [0, 0], sizes = [1, 64], strides = [1, 1]} : vector<8x128xf32> to vector<1x64xf32>
    %c0_138 = arith.constant 0 : index
    %c0_139 = arith.constant 0 : index
    %178 = vector.load %arg21[%c0_138, %c0_139] : memref<2x512xf32, #tpu.memory_space<vmem>>, vector<1x64xf32>
    tpu.vector_store %arg21[%c0_138, %c0_139], %177 {strides = array<i32>} : memref<2x512xf32, #tpu.memory_space<vmem>>, vector<1x64xf32>,
    %179 = vector.extract_strided_slice %176 {offsets = [0, 64], sizes = [1, 64], strides = [1, 1]} : vector<8x128xf32> to vector<1x64xf32>
    %c1_140 = arith.constant 1 : index
    %c0_141 = arith.constant 0 : index
    %180 = vector.load %arg21[%c1_140, %c0_141] : memref<2x512xf32, #tpu.memory_space<vmem>>, vector<1x64xf32>
    tpu.vector_store %arg21[%c1_140, %c0_141], %179 {strides = array<i32>} : memref<2x512xf32, #tpu.memory_space<vmem>>, vector<1x64xf32>,
    %181 = vector.extract_strided_slice %176 {offsets = [1, 0], sizes = [1, 64], strides = [1, 1]} : vector<8x128xf32> to vector<1x64xf32>
    %c0_142 = arith.constant 0 : index
    %c64 = arith.constant 64 : index
    %182 = vector.load %arg21[%c0_142, %c64] : memref<2x512xf32, #tpu.memory_space<vmem>>, vector<1x64xf32>
    tpu.vector_store %arg21[%c0_142, %c64], %181 {strides = array<i32>} : memref<2x512xf32, #tpu.memory_space<vmem>>, vector<1x64xf32>,
    %183 = vector.extract_strided_slice %176 {offsets = [1, 64], sizes = [1, 64], strides = [1, 1]} : vector<8x128xf32> to vector<1x64xf32>
    %c1_143 = arith.constant 1 : index
    %c64_144 = arith.constant 64 : index
    %184 = vector.load %arg21[%c1_143, %c64_144] : memref<2x512xf32, #tpu.memory_space<vmem>>, vector<1x64xf32>
    tpu.vector_store %arg21[%c1_143, %c64_144], %183 {strides = array<i32>} : memref<2x512xf32, #tpu.memory_space<vmem>>, vector<1x64xf32>,
    %185 = vector.extract_strided_slice %176 {offsets = [2, 0], sizes = [1, 64], strides = [1, 1]} : vector<8x128xf32> to vector<1x64xf32>
    %c0_145 = arith.constant 0 : index
    %c128 = arith.constant 128 : index
    %186 = vector.load %arg21[%c0_145, %c128] : memref<2x512xf32, #tpu.memory_space<vmem>>, vector<1x64xf32>
    tpu.vector_store %arg21[%c0_145, %c128], %185 {strides = array<i32>} : memref<2x512xf32, #tpu.memory_space<vmem>>, vector<1x64xf32>,
    %187 = vector.extract_strided_slice %176 {offsets = [2, 64], sizes = [1, 64], strides = [1, 1]} : vector<8x128xf32> to vector<1x64xf32>
    %c1_146 = arith.constant 1 : index
    %c128_147 = arith.constant 128 : index
    %188 = vector.load %arg21[%c1_146, %c128_147] : memref<2x512xf32, #tpu.memory_space<vmem>>, vector<1x64xf32>
    tpu.vector_store %arg21[%c1_146, %c128_147], %187 {strides = array<i32>} : memref<2x512xf32, #tpu.memory_space<vmem>>, vector<1x64xf32>,
    %189 = vector.extract_strided_slice %176 {offsets = [3, 0], sizes = [1, 64], strides = [1, 1]} : vector<8x128xf32> to vector<1x64xf32>
    %c0_148 = arith.constant 0 : index
    %c192 = arith.constant 192 : index
    %190 = vector.load %arg21[%c0_148, %c192] : memref<2x512xf32, #tpu.memory_space<vmem>>, vector<1x64xf32>
    tpu.vector_store %arg21[%c0_148, %c192], %189 {strides = array<i32>} : memref<2x512xf32, #tpu.memory_space<vmem>>, vector<1x64xf32>,
    %191 = vector.extract_strided_slice %176 {offsets = [3, 64], sizes = [1, 64], strides = [1, 1]} : vector<8x128xf32> to vector<1x64xf32>
    %c1_149 = arith.constant 1 : index
    %c192_150 = arith.constant 192 : index
    %192 = vector.load %arg21[%c1_149, %c192_150] : memref<2x512xf32, #tpu.memory_space<vmem>>, vector<1x64xf32>
    tpu.vector_store %arg21[%c1_149, %c192_150], %191 {strides = array<i32>} : memref<2x512xf32, #tpu.memory_space<vmem>>, vector<1x64xf32>,
    %193 = vector.extract_strided_slice %176 {offsets = [4, 0], sizes = [1, 64], strides = [1, 1]} : vector<8x128xf32> to vector<1x64xf32>
    %c0_151 = arith.constant 0 : index
    %c256 = arith.constant 256 : index
    %194 = vector.load %arg21[%c0_151, %c256] : memref<2x512xf32, #tpu.memory_space<vmem>>, vector<1x64xf32>
    tpu.vector_store %arg21[%c0_151, %c256], %193 {strides = array<i32>} : memref<2x512xf32, #tpu.memory_space<vmem>>, vector<1x64xf32>,
    %195 = vector.extract_strided_slice %176 {offsets = [4, 64], sizes = [1, 64], strides = [1, 1]} : vector<8x128xf32> to vector<1x64xf32>
    %c1_152 = arith.constant 1 : index
    %c256_153 = arith.constant 256 : index
    %196 = vector.load %arg21[%c1_152, %c256_153] : memref<2x512xf32, #tpu.memory_space<vmem>>, vector<1x64xf32>
    tpu.vector_store %arg21[%c1_152, %c256_153], %195 {strides = array<i32>} : memref<2x512xf32, #tpu.memory_space<vmem>>, vector<1x64xf32>,
    %197 = vector.extract_strided_slice %176 {offsets = [5, 0], sizes = [1, 64], strides = [1, 1]} : vector<8x128xf32> to vector<1x64xf32>
    %c0_154 = arith.constant 0 : index
    %c320 = arith.constant 320 : index
    %198 = vector.load %arg21[%c0_154, %c320] : memref<2x512xf32, #tpu.memory_space<vmem>>, vector<1x64xf32>
    tpu.vector_store %arg21[%c0_154, %c320], %197 {strides = array<i32>} : memref<2x512xf32, #tpu.memory_space<vmem>>, vector<1x64xf32>,
    %199 = vector.extract_strided_slice %176 {offsets = [5, 64], sizes = [1, 64], strides = [1, 1]} : vector<8x128xf32> to vector<1x64xf32>
    %c1_155 = arith.constant 1 : index
    %c320_156 = arith.constant 320 : index
    %200 = vector.load %arg21[%c1_155, %c320_156] : memref<2x512xf32, #tpu.memory_space<vmem>>, vector<1x64xf32>
    tpu.vector_store %arg21[%c1_155, %c320_156], %199 {strides = array<i32>} : memref<2x512xf32, #tpu.memory_space<vmem>>, vector<1x64xf32>,
    %201 = vector.extract_strided_slice %176 {offsets = [6, 0], sizes = [1, 64], strides = [1, 1]} : vector<8x128xf32> to vector<1x64xf32>
    %c0_157 = arith.constant 0 : index
    %c384 = arith.constant 384 : index
    %202 = vector.load %arg21[%c0_157, %c384] : memref<2x512xf32, #tpu.memory_space<vmem>>, vector<1x64xf32>
    tpu.vector_store %arg21[%c0_157, %c384], %201 {strides = array<i32>} : memref<2x512xf32, #tpu.memory_space<vmem>>, vector<1x64xf32>,
    %203 = vector.extract_strided_slice %176 {offsets = [6, 64], sizes = [1, 64], strides = [1, 1]} : vector<8x128xf32> to vector<1x64xf32>
    %c1_158 = arith.constant 1 : index
    %c384_159 = arith.constant 384 : index
    %204 = vector.load %arg21[%c1_158, %c384_159] : memref<2x512xf32, #tpu.memory_space<vmem>>, vector<1x64xf32>
    tpu.vector_store %arg21[%c1_158, %c384_159], %203 {strides = array<i32>} : memref<2x512xf32, #tpu.memory_space<vmem>>, vector<1x64xf32>,
    %205 = vector.extract_strided_slice %176 {offsets = [7, 0], sizes = [1, 64], strides = [1, 1]} : vector<8x128xf32> to vector<1x64xf32>
    %c0_160 = arith.constant 0 : index
    %c448 = arith.constant 448 : index
    %206 = vector.load %arg21[%c0_160, %c448] : memref<2x512xf32, #tpu.memory_space<vmem>>, vector<1x64xf32>
    tpu.vector_store %arg21[%c0_160, %c448], %205 {strides = array<i32>} : memref<2x512xf32, #tpu.memory_space<vmem>>, vector<1x64xf32>,
    %207 = vector.extract_strided_slice %176 {offsets = [7, 64], sizes = [1, 64], strides = [1, 1]} : vector<8x128xf32> to vector<1x64xf32>
    %c1_161 = arith.constant 1 : index
    %c448_162 = arith.constant 448 : index
    %208 = vector.load %arg21[%c1_161, %c448_162] : memref<2x512xf32, #tpu.memory_space<vmem>>, vector<1x64xf32>
    tpu.vector_store %arg21[%c1_161, %c448_162], %207 {strides = array<i32>} : memref<2x512xf32, #tpu.memory_space<vmem>>, vector<1x64xf32>,
    %c0_163 = arith.constant 0 : index
    %c0_164 = arith.constant 0 : index
    %209 = vector.load %arg21[%c0_163, %c0_164] : memref<2x512xf32, #tpu.memory_space<vmem>>, vector<2x512xf32>
    %210 = arith.truncf %209 : vector<2x512xf32> to vector<2x512xbf16>
    %c0_165 = arith.constant 0 : index
    %c0_166 = arith.constant 0 : index
    %211 = vector.load %arg14[%c0_165, %c0_166] : memref<512x512xbf16, #tpu.memory_space<vmem>>, vector<512x512xbf16>
    %cst_167 = arith.constant dense<0.000000e+00> : vector<2x512xf32>
    %212 = tpu.matmul %210, %211, %cst_167 {dimension_numbers = #tpu.dot_dimension_numbers<[1], [0], [0], [1], [0, 0, 1, 1], [], []>} : vector<2x512xbf16>, vector<512x512xbf16>, vector<2x512xf32> -> vector<2x512xf32>
    %c0_168 = arith.constant 0 : index
    %c0_169 = arith.constant 0 : index
    %213 = vector.load %arg15[%c0_168, %c0_169] : memref<1x512xf32, #tpu.memory_space<vmem>>, vector<1x512xf32>
    %214 = vector.broadcast %213 : vector<1x512xf32> to vector<2x512xf32>
    %215 = arith.addf %212, %214 : vector<2x512xf32>
    %cst_170 = arith.constant 0.000000e+00 : f32
    %216 = vector.broadcast %cst_170 : f32 to vector<2x512xf32>
    %217 = arith.maximumf %215, %216 : vector<2x512xf32>
    %c0_171 = arith.constant 0 : index
    %c0_172 = arith.constant 0 : index
    %218 = vector.load %arg16[%c0_171, %c0_172] : memref<1x512xf32, #tpu.memory_space<vmem>>, vector<1x512xf32>
    %219 = vector.broadcast %218 : vector<1x512xf32> to vector<2x512xf32>
    %220 = arith.mulf %217, %219 : vector<2x512xf32>
    %cst_173 = arith.constant dense<0.000000e+00> : vector<2xf32>
    %221 = vector.multi_reduction <add>, %220, %cst_173 [1] : vector<2x512xf32> to vector<2xf32>
    %222 = vector.shape_cast %221 : vector<2xf32> to vector<2x1xf32>
    %c0_174 = arith.constant 0 : index
    %c0_175 = arith.constant 0 : index
    %223 = vector.load %arg17[%c0_174, %c0_175] : memref<1x1xf32, #tpu.memory_space<vmem>>, vector<1x1xf32>
    %224 = vector.broadcast %223 : vector<1x1xf32> to vector<2x1xf32>
    %225 = arith.addf %222, %224 : vector<2x1xf32>
    %c0_176 = arith.constant 0 : index
    %c0_177 = arith.constant 0 : index
    %226 = vector.load %arg18[%c0_176, %c0_177] : memref<2x1xf32, #tpu.memory_space<vmem>>, vector<2x1xf32>
    tpu.vector_store %arg18[%c0_176, %c0_177], %225 {strides = array<i32>} : memref<2x1xf32, #tpu.memory_space<vmem>>, vector<2x1xf32>,
    return
  }
}

</mosaic_0001>

<llo_original>
// kernel: tpu_custom_call.1
$region0: #{tpu_custom_call.1}
  #allocation0 [shape = 'u32[]', space=smem, size = 0x4, offset = 0x4, fixed_abs, tag = 'smem constant byte address 0x4 - core index']
  #allocation1 [shape = 'u32[72,128]{1,0:T(1,128)}', space=vmem, size = 0x9000, scoped, tag = 'internal scratch']
  #allocation2 [shape = 'f32[8,136]{1,0:T(8,128)}', space=vmem, size = 0x2000, scoped, tag = 'scratch operand']
  #allocation3 [shape = 'f32[32,128]{1,0:T(8,128)}', space=vmem, size = 0x4000, scoped, tag = 'scratch operand']
  #allocation4 [shape = 'f32[2,512]{1,0:T(2,128)}', space=vmem, size = 0x1000, scoped, tag = 'scratch operand']
  #allocation5 [shape = 'f32[1,1]{1,0:T(1,128)S(1)}', space=vmem, size = 0x200, scoped, tag = 'scoped memory for tpu_custom_call.1']
  %s0 = inlined_call_operand.vmem [shape: f32[4,128], index: 0, kind: input, shape index: {}]
  %s1 = inlined_call_operand.vmem [shape: f32[4,1,128], index: 1, kind: input, shape index: {}]
  %s2 = inlined_call_operand.vmem [shape: f32[4,16], index: 2, kind: input, shape index: {}]
  %s3 = inlined_call_operand.vmem [shape: f32[4,1], index: 3, kind: input, shape index: {}]
  %s4 = inlined_call_operand.vmem [shape: f32[4,1], index: 4, kind: input, shape index: {}]
  %s5 = inlined_call_operand.vmem [shape: f32[4,1], index: 5, kind: input, shape index: {}]
  %s6 = inlined_call_operand.vmem [shape: f32[8,16], index: 6, kind: input, shape index: {}]
  %s7 = inlined_call_operand.vmem [shape: f32[8,1], index: 7, kind: input, shape index: {}]
  %s8 = inlined_call_operand.vmem [shape: f32[8,1], index: 8, kind: input, shape index: {}]
  %s9 = inlined_call_operand.vmem [shape: f32[8,1], index: 9, kind: input, shape index: {}]
  %s10 = inlined_call_operand.vmem [shape: f32[8,32], index: 10, kind: input, shape index: {}]
  %s11 = inlined_call_operand.vmem [shape: f32[8,1], index: 11, kind: input, shape index: {}]
  %s12 = inlined_call_operand.vmem [shape: f32[8,1], index: 12, kind: input, shape index: {}]
  %s13 = inlined_call_operand.vmem [shape: f32[8,1], index: 13, kind: input, shape index: {}]
  %s14 = inlined_call_operand.hbm [shape: bf16[512,512], index: 14, kind: input, shape index: {}]
  %s15 = inlined_call_operand.vmem [shape: f32[1,512], index: 15, kind: input, shape index: {}]
  %s16 = inlined_call_operand.vmem [shape: f32[1,512], index: 16, kind: input, shape index: {}]
  %s17 = inlined_call_operand.<no memory space> [shape: f32[1,1], index: 17, kind: input, shape index: {}]
  %s18 = inlined_call_operand.vmem [shape: f32[2,1], index: 18, kind: output, shape index: {}]
  %s19 = sld [smem:[#allocation0]]
  $region86: #{tpu_custom_call.1} parent=0
    _
  %s21 = ssub.s32 1, %s19
  %s22 = scalar_select 0, %s21, %s19
  %v23 = vstv %s17
  %24 = vst [vmem:[#allocation5] sm:$0x1] %v23
  $region1: #{tpu_custom_call.1} parent=0
    #allocation6 [shape = 'u8[524288]{0}', space=vmem, size = 0x80000, scoped, tag = 'input window, operand 14, single buffered']
    #allocation7 [shape = 's32[1]{0}', space=sflag, size = 0x4, scoped, tag = 'scoped memory for tpu_custom_call.1']
    %25 = vsyncpa [#allocation7], 0
    // Predicated region
    $region2: #{tpu_custom_call.1} parent=1 // pred_check
      _
    $region3: #{tpu_custom_call.1} parent=1 // pred_check_branch
      %27 = sbr.rel (0) target = $region5
    $region4: #{tpu_custom_call.1} parent=1 // pred_region
      _
    $region5: #{tpu_custom_call.1} parent=1 // pred_fallthru
      _
    // Predicated region
    $region6: #{tpu_custom_call.1} parent=1 // pred_check
      _
    $region7: #{tpu_custom_call.1} parent=1 // pred_check_branch
      %29 = sbr.rel (0) target = $region9
    $region8: #{tpu_custom_call.1} parent=1 // pred_region
      _
    $region9: #{tpu_custom_call.1} parent=1 // pred_fallthru
      _
    // Predicated region
    $region10: #{tpu_custom_call.1} parent=1 // pred_check
      _
    $region11: #{tpu_custom_call.1} parent=1 // pred_check_branch
      %31 = sbr.rel (0) target = $region13
    $region12: #{tpu_custom_call.1} parent=1 // pred_region
      _
    $region13: #{tpu_custom_call.1} parent=1 // pred_fallthru
      _
    // Predicated region
    $region14: #{tpu_custom_call.1} parent=1 // pred_check
      _
    $region15: #{tpu_custom_call.1} parent=1 // pred_check_branch
      %33 = sbr.rel (0) target = $region17
    $region16: #{tpu_custom_call.1} parent=1 // pred_region
      _
    $region17: #{tpu_custom_call.1} parent=1 // pred_fallthru
      _
    // Predicated region
    $region18: #{tpu_custom_call.1} parent=1 // pred_check
      _
    $region19: #{tpu_custom_call.1} parent=1 // pred_check_branch
      %35 = sbr.rel (0) target = $region21
    $region20: #{tpu_custom_call.1} parent=1 // pred_region
      _
    $region21: #{tpu_custom_call.1} parent=1 // pred_fallthru
      _
    // Predicated region
    $region22: #{tpu_custom_call.1} parent=1 // pred_check
      _
    $region23: #{tpu_custom_call.1} parent=1 // pred_check_branch
      %37 = sbr.rel (0) target = $region25
    $region24: #{tpu_custom_call.1} parent=1 // pred_region
      _
    $region25: #{tpu_custom_call.1} parent=1 // pred_fallthru
      _
    // Predicated region
    $region26: #{tpu_custom_call.1} parent=1 // pred_check
      _
    $region27: #{tpu_custom_call.1} parent=1 // pred_check_branch
      %39 = sbr.rel (0) target = $region29
    $region28: #{tpu_custom_call.1} parent=1 // pred_region
      _
    $region29: #{tpu_custom_call.1} parent=1 // pred_fallthru
      _
    // Predicated region
    $region30: #{tpu_custom_call.1} parent=1 // pred_check
      _
    $region31: #{tpu_custom_call.1} parent=1 // pred_check_branch
      %41 = sbr.rel (0) target = $region33
    $region32: #{tpu_custom_call.1} parent=1 // pred_region
      _
    $region33: #{tpu_custom_call.1} parent=1 // pred_fallthru
      _
    // Predicated region
    $region34: #{tpu_custom_call.1} parent=1 // pred_check
      _
    $region35: #{tpu_custom_call.1} parent=1 // pred_check_branch
      %43 = sbr.rel (0) target = $region37
    $region36: #{tpu_custom_call.1} parent=1 // pred_region
      _
    $region37: #{tpu_custom_call.1} parent=1 // pred_fallthru
      _
    // Predicated region
    $region38: #{tpu_custom_call.1} parent=1 // pred_check
      _
    $region39: #{tpu_custom_call.1} parent=1 // pred_check_branch
      %45 = sbr.rel (0) target = $region41
    $region40: #{tpu_custom_call.1} parent=1 // pred_region
      _
    $region41: #{tpu_custom_call.1} parent=1 // pred_fallthru
      _
    // Predicated region
    $region42: #{tpu_custom_call.1} parent=1 // pred_check
      _
    $region43: #{tpu_custom_call.1} parent=1 // pred_check_branch
      %47 = sbr.rel (0) target = $region45
    $region44: #{tpu_custom_call.1} parent=1 // pred_region
      _
    $region45: #{tpu_custom_call.1} parent=1 // pred_fallthru
      _
    // Predicated region
    $region46: #{tpu_custom_call.1} parent=1 // pred_check
      _
    $region47: #{tpu_custom_call.1} parent=1 // pred_check_branch
      %49 = sbr.rel (0) target = $region49
    $region48: #{tpu_custom_call.1} parent=1 // pred_region
      _
    $region49: #{tpu_custom_call.1} parent=1 // pred_fallthru
      _
    // Predicated region
    $region50: #{tpu_custom_call.1} parent=1 // pred_check
      _
    $region51: #{tpu_custom_call.1} parent=1 // pred_check_branch
      %51 = sbr.rel (0) target = $region53
    $region52: #{tpu_custom_call.1} parent=1 // pred_region
      _
    $region53: #{tpu_custom_call.1} parent=1 // pred_fallthru
      _
    // Predicated region
    $region54: #{tpu_custom_call.1} parent=1 // pred_check
      _
    $region55: #{tpu_custom_call.1} parent=1 // pred_check_branch
      %53 = sbr.rel (0) target = $region57
    $region56: #{tpu_custom_call.1} parent=1 // pred_region
      _
    $region57: #{tpu_custom_call.1} parent=1 // pred_fallthru
      _
    // Predicated region
    $region58: #{tpu_custom_call.1} parent=1 // pred_check
      _
    $region59: #{tpu_custom_call.1} parent=1 // pred_check_branch
      %55 = sbr.rel (0) target = $region61
    $region60: #{tpu_custom_call.1} parent=1 // pred_region
      %57 = vsyncadd [#allocation7], 0
      %s58 = sshll.u32 %s14, 4
      %s59 = int_to_ptr.hbm [resolvable:$true] %s58
      %s60 = sshll.u32 [#allocation6], 4
      %s61 = int_to_ptr.vmem [resolvable:$true] %s60
      %66 = dma.hbm_to_vmem [thread:$0]  %s59, 16384, %s61, [#allocation7], 256, 256, 16
    $region61: #{tpu_custom_call.1} parent=1 // pred_fallthru
      _
    // Predicated region
    $region62: #{tpu_custom_call.1} parent=1 // pred_check
      _
    $region63: #{tpu_custom_call.1} parent=1 // pred_check_branch
      %68 = sbr.rel (0) target = $region65
    $region64: #{tpu_custom_call.1} parent=1 // pred_region
      _
    $region65: #{tpu_custom_call.1} parent=1 // pred_fallthru
      _
    // Predicated region
    $region66: #{tpu_custom_call.1} parent=1 // pred_check
      _
    $region67: #{tpu_custom_call.1} parent=1 // pred_check_branch
      %70 = sbr.rel (0) target = $region69
    $region68: #{tpu_custom_call.1} parent=1 // pred_region
      _
    $region69: #{tpu_custom_call.1} parent=1 // pred_fallthru
      _
    // Predicated region
    $region70: #{tpu_custom_call.1} parent=1 // pred_check
      _
    $region71: #{tpu_custom_call.1} parent=1 // pred_check_branch
      %72 = sbr.rel (0) target = $region73
    $region72: #{tpu_custom_call.1} parent=1 // pred_region
      _
    $region73: #{tpu_custom_call.1} parent=1 // pred_fallthru
      _
    // Predicated region
    $region74: #{tpu_custom_call.1} parent=1 // pred_check
      _
    $region75: #{tpu_custom_call.1} parent=1 // pred_check_branch
      %74 = sbr.rel (0) target = $region77
    $region76: #{tpu_custom_call.1} parent=1 // pred_region
      %76 = dma.done [#allocation7], 16384
    $region77: #{tpu_custom_call.1} parent=1 // pred_fallthru
      _
    %77 = vst [vmem:[#allocation2] sm:$0xff] 0.0
    %vm78 = vcmask 64512
    %79 = vst.msk [vmem:[#allocation2 + $0x8] sm:$0xff] %vm78, 0.0
    %v80 = vld [vmem:[%s0] sm:$0xf]
    %82 = vrot.lane.b32.xlu0 %v80, 4
    %v83 = vpop.permute.xlu0 %82
    %vm85 = vcmask 1043488
    %86 = vst.msk [vmem:[#allocation2] sm:$0xf] %vm85, %v83
    %vm87 = vcmask 27648
    %88 = vst.msk [vmem:[#allocation2 + $0x8] sm:$0xf] %vm87, %v83
    %v89 = vld [vmem:[#allocation2] sm:$0xf]
    %v90 = vld [vmem:[#allocation2 + $0x8] sm:$0xf]
    %v91 = vld [vmem:[%s1] sm:$0x1]
    %v93 = vperm.slane %v91, 0
    %94 = vrot.lane.b32.xlu0 %v93, 3
    %v95 = vpop.permute.xlu0 %94
    %v97 = vmul.f32 %v89, %v95
    %v98 = vmul.f32 %v90, %v95
    %101 = vrot.lane.b32.xlu0 %v97, 125
    %v102 = vpop.permute.xlu0 %101
    %103 = vrot.lane.b32.xlu0 %v98, 125
    %v104 = vpop.permute.xlu0 %103
    %vm105 = vcmask 1022976
    %v106 = vsel %vm105, %v102, %v104
    %108 = vst [vmem:[#allocation3] sm:$0xf] %v106
    %v109 = vld [vmem:[#allocation2] sm:$0xf]
    %v110 = vld [vmem:[#allocation2 + $0x8] sm:$0xf]
    %s111 = scalar_lea.vmem %s1, 1
    %v112 = vld [vmem:[%s111] sm:$0x1]
    %v114 = vperm.slane %v112, 0
    %115 = vrot.lane.b32.xlu0 %v114, 4
    %v116 = vpop.permute.xlu0 %115
    %v118 = vmul.f32 %v109, %v116
    %v119 = vmul.f32 %v110, %v116
    %122 = vrot.lane.b32.xlu0 %v118, 124
    %v123 = vpop.permute.xlu0 %122
    %124 = vrot.lane.b32.xlu0 %v119, 124
    %v125 = vpop.permute.xlu0 %124
    %vm126 = vcmask 1014784
    %v127 = vsel %vm126, %v123, %v125
    %129 = vst [vmem:[#allocation3 + $0x4] sm:$0xf] %v127
    %v130 = vld [vmem:[#allocation2] sm:$0xf]
    %v131 = vld [vmem:[#allocation2 + $0x8] sm:$0xf]
    %s132 = scalar_lea.vmem %s1, 2
    %v133 = vld [vmem:[%s132] sm:$0x1]
    %v135 = vperm.slane %v133, 0
    %136 = vrot.lane.b32.xlu0 %v135, 5
    %v137 = vpop.permute.xlu0 %136
    %v139 = vmul.f32 %v130, %v137
    %v140 = vmul.f32 %v131, %v137
    %143 = vrot.lane.b32.xlu0 %v139, 123
    %v144 = vpop.permute.xlu0 %143
    %145 = vrot.lane.b32.xlu0 %v140, 123
    %v146 = vpop.permute.xlu0 %145
    %vm147 = vcmask 1006592
    %v148 = vsel %vm147, %v144, %v146
    %150 = vst [vmem:[#allocation3 + $0x8] sm:$0xf] %v148
    %v151 = vld [vmem:[#allocation2] sm:$0xf]
    %v152 = vld [vmem:[#allocation2 + $0x8] sm:$0xf]
    %s153 = scalar_lea.vmem %s1, 3
    %v154 = vld [vmem:[%s153] sm:$0x1]
    %v156 = vperm.slane %v154, 0
    %157 = vrot.lane.b32.xlu0 %v156, 6
    %v158 = vpop.permute.xlu0 %157
    %v160 = vmul.f32 %v151, %v158
    %v161 = vmul.f32 %v152, %v158
    %164 = vrot.lane.b32.xlu0 %v160, 122
    %v165 = vpop.permute.xlu0 %164
    %166 = vrot.lane.b32.xlu0 %v161, 122
    %v167 = vpop.permute.xlu0 %166
    %vm168 = vcmask 998400
    %v169 = vsel %vm168, %v165, %v167
    %171 = vst [vmem:[#allocation3 + $0xc] sm:$0xf] %v169
    %v172 = vld [vmem:[#allocation3] sm:$0xff]
    %v173 = vld [vmem:[#allocation3 + $0x8] sm:$0xff]
    %v174 = vld [vmem:[%s2] sm:$0xf]
    %v175 = vld [vmem:[%s3] sm:$0xf]
    %177 = vset.pattern.permute.xlu0 0
    %178 = vperm.xlu0 %177, %v175
    %v179 = vpop.permute.xlu0 %178
    %vm181 = vcmask 130048
    %v183 = vsel %vm181, %v174, 0
    %185 = vmatpush.msra.mxu0 0.0
    %186 = vmatpush.msra.mxu0 0.0
    %187 = vmatpush.msra.mxu0 0.0
    %188 = vmatpush.msra.mxu0 0.0
    %189 = vmatpush.msra.mxu0 0.0
    %190 = vmatpush.msra.mxu0 0.0
    %191 = vmatpush.msra.mxu0 0.0
    %192 = vmatpush.msra.mxu0 0.0
    %193 = vmatpush.msra.mxu0 0.0
    %194 = vmatpush.msra.mxu0 0.0
    %195 = vmatpush.msra.mxu0 0.0
    %196 = vmatpush.msra.mxu0 0.0
    %197 = vmatpush.msra.mxu0 0.0
    %198 = vmatpush.msra.mxu0 0.0
    %199 = vmatpush.msra.mxu0 %v173
    %200 = vmatpush.msra.mxu0 %v172
    %201 = vmatmul.f32.gmra.mxu0 %v183
    %v202 = vpop.f32.mrf.mxu0
    %v203 = vadd.f32 %v179, %v202
    %204 = vdwg.mxu0
    %v205 = vmax.f32 %v203, 0.0
    %vm206 = vcmask 1043456
    %v207 = vsel %vm206, %v205, 0.0
    %208 = vadd.xlane.f32.xlu0 %v207
    %v209 = vpop.xlane.xlu0 %208
    %v210 = vrcp.pop 128.0
    %v211 = vmul.f32 128.0, %v210
    %v212 = vsub.f32 1.0, %v211
    %v213 = vmul.f32 %v210, %v212
    %v214 = vadd.f32 %v210, %v213
    %vm215 = vweird.f32 %v210
    %v216 = vsel %vm215, %v210, %v214
    %v217 = vmul.f32 %v209, %v216
    %v218 = vmul.f32 %v205, %v205
    %v219 = vsel %vm206, %v218, 0.0
    %220 = vadd.xlane.f32.xlu0 %v219
    %v221 = vpop.xlane.xlu0 %220
    %v222 = vmul.f32 %v221, %v216
    %v223 = vmul.f32 %v217, %v217
    %v224 = vsub.f32 %v222, %v223
    %v225 = vsub.f32 %v205, %v217
    %v226 = vadd.f32 %v224, 1e-05
    %v227 = vrsqrt.pop %v226
    %v228 = vmul.f32 %v227, %v226
    %v229 = vmul.f32 %v228, %v227
    %v230 = vmul.f32 0.5, %v229
    %v231 = vsub.f32 1.5, %v230
    %v232 = vmul.f32 %v227, %v231
    %vm233 = vweird.f32 %v226
    %vm234 = vweird.f32 %v227
    %vm235 = vmor %vm233, %vm234
    %v236 = vsel %vm235, %v227, %v232
    %v237 = vmul.f32 %v225, %v236
    %v238 = vld [vmem:[%s4] sm:$0xf]
    %240 = vset.pattern.permute.xlu0 0
    %241 = vperm.xlu0 %240, %v238
    %v242 = vpop.permute.xlu0 %241
    %v244 = vmul.f32 %v237, %v242
    %v245 = vld [vmem:[%s5] sm:$0xf]
    %247 = vset.pattern.permute.xlu0 0
    %248 = vperm.xlu0 %247, %v245
    %v249 = vpop.permute.xlu0 %248
    %v251 = vadd.f32 %v244, %v249
    %253 = vrot.lane.b32.xlu0 %v251, 4
    %v254 = vpop.permute.xlu0 %253
    %256 = vst.msk [vmem:[#allocation2] sm:$0xf] %vm85, %v254
    %257 = vst.msk [vmem:[#allocation2 + $0x8] sm:$0xf] %vm87, %v254
    %v258 = vld [vmem:[#allocation2] sm:$0xf]
    %v259 = vld [vmem:[#allocation2 + $0x8] sm:$0xf]
    %v260 = vld [vmem:[%s1] sm:$0x1]
    %v262 = vperm.slane %v260, 0
    %263 = vrot.lane.b32.xlu0 %v262, 3
    %v264 = vpop.permute.xlu0 %263
    %v266 = vmul.f32 %v258, %v264
    %v267 = vmul.f32 %v259, %v264
    %270 = vrot.lane.b32.xlu0 %v266, 125
    %v271 = vpop.permute.xlu0 %270
    %272 = vrot.lane.b32.xlu0 %v267, 125
    %v273 = vpop.permute.xlu0 %272
    %v274 = vsel %vm105, %v271, %v273
    %276 = vst [vmem:[#allocation3] sm:$0xf] %v274
    %v277 = vld [vmem:[#allocation2] sm:$0xf]
    %v278 = vld [vmem:[#allocation2 + $0x8] sm:$0xf]
    %v279 = vld [vmem:[%s111] sm:$0x1]
    %v281 = vperm.slane %v279, 0
    %282 = vrot.lane.b32.xlu0 %v281, 4
    %v283 = vpop.permute.xlu0 %282
    %v285 = vmul.f32 %v277, %v283
    %v286 = vmul.f32 %v278, %v283
    %289 = vrot.lane.b32.xlu0 %v285, 124
    %v290 = vpop.permute.xlu0 %289
    %291 = vrot.lane.b32.xlu0 %v286, 124
    %v292 = vpop.permute.xlu0 %291
    %v293 = vsel %vm126, %v290, %v292
    %295 = vst [vmem:[#allocation3 + $0x4] sm:$0xf] %v293
    %v296 = vld [vmem:[#allocation2] sm:$0xf]
    %v297 = vld [vmem:[#allocation2 + $0x8] sm:$0xf]
    %v298 = vld [vmem:[%s132] sm:$0x1]
    %v300 = vperm.slane %v298, 0
    %301 = vrot.lane.b32.xlu0 %v300, 5
    %v302 = vpop.permute.xlu0 %301
    %v304 = vmul.f32 %v296, %v302
    %v305 = vmul.f32 %v297, %v302
    %308 = vrot.lane.b32.xlu0 %v304, 123
    %v309 = vpop.permute.xlu0 %308
    %310 = vrot.lane.b32.xlu0 %v305, 123
    %v311 = vpop.permute.xlu0 %310
    %v312 = vsel %vm147, %v309, %v311
    %314 = vst [vmem:[#allocation3 + $0x8] sm:$0xf] %v312
    %v315 = vld [vmem:[#allocation2] sm:$0xf]
    %v316 = vld [vmem:[#allocation2 + $0x8] sm:$0xf]
    %v317 = vld [vmem:[%s153] sm:$0x1]
    %v319 = vperm.slane %v317, 0
    %320 = vrot.lane.b32.xlu0 %v319, 6
    %v321 = vpop.permute.xlu0 %320
    %v323 = vmul.f32 %v315, %v321
    %v324 = vmul.f32 %v316, %v321
    %327 = vrot.lane.b32.xlu0 %v323, 122
    %v328 = vpop.permute.xlu0 %327
    %329 = vrot.lane.b32.xlu0 %v324, 122
    %v330 = vpop.permute.xlu0 %329
    %v331 = vsel %vm168, %v328, %v330
    %333 = vst [vmem:[#allocation3 + $0xc] sm:$0xf] %v331
    %v334 = vld [vmem:[#allocation3] sm:$0xff]
    %v335 = vld [vmem:[#allocation3 + $0x8] sm:$0xff]
    %v336 = vld [vmem:[%s6] sm:$0xff]
    %v337 = vld [vmem:[%s7] sm:$0xff]
    %339 = vset.pattern.permute.xlu0 0
    %340 = vperm.xlu0 %339, %v337
    %v341 = vpop.permute.xlu0 %340
    %v344 = vsel %vm181, %v336, 0
    %346 = vmatpush.msra.mxu0 0.0
    %347 = vmatpush.msra.mxu0 0.0
    %348 = vmatpush.msra.mxu0 0.0
    %349 = vmatpush.msra.mxu0 0.0
    %350 = vmatpush.msra.mxu0 0.0
    %351 = vmatpush.msra.mxu0 0.0
    %352 = vmatpush.msra.mxu0 0.0
    %353 = vmatpush.msra.mxu0 0.0
    %354 = vmatpush.msra.mxu0 0.0
    %355 = vmatpush.msra.mxu0 0.0
    %356 = vmatpush.msra.mxu0 0.0
    %357 = vmatpush.msra.mxu0 0.0
    %358 = vmatpush.msra.mxu0 0.0
    %359 = vmatpush.msra.mxu0 0.0
    %360 = vmatpush.msra.mxu0 %v335
    %361 = vmatpush.msra.mxu0 %v334
    %362 = vmatmul.f32.gmra.mxu0 %v344
    %v363 = vpop.f32.mrf.mxu0
    %v364 = vadd.f32 %v341, %v363
    %365 = vdwg.mxu0
    %v366 = vmax.f32 %v364, 0.0
    %367 = vadd.xlane.f32.xlu0 %v366
    %v368 = vpop.xlane.xlu0 %367
    %v369 = vmul.f32 %v368, %v216
    %v370 = vmul.f32 %v366, %v366
    %371 = vadd.xlane.f32.xlu0 %v370
    %v372 = vpop.xlane.xlu0 %371
    %v373 = vmul.f32 %v372, %v216
    %v374 = vmul.f32 %v369, %v369
    %v375 = vsub.f32 %v373, %v374
    %v376 = vsub.f32 %v366, %v369
    %v377 = vadd.f32 %v375, 1e-05
    %v378 = vrsqrt.pop %v377
    %v379 = vmul.f32 %v378, %v377
    %v380 = vmul.f32 %v379, %v378
    %v381 = vmul.f32 0.5, %v380
    %v382 = vsub.f32 1.5, %v381
    %v383 = vmul.f32 %v378, %v382
    %vm384 = vweird.f32 %v377
    %vm385 = vweird.f32 %v378
    %vm386 = vmor %vm384, %vm385
    %v387 = vsel %vm386, %v378, %v383
    %v388 = vmul.f32 %v376, %v387
    %v389 = vld [vmem:[%s8] sm:$0xff]
    %391 = vset.pattern.permute.xlu0 0
    %392 = vperm.xlu0 %391, %v389
    %v393 = vpop.permute.xlu0 %392
    %v395 = vmul.f32 %v388, %v393
    %v396 = vld [vmem:[%s9] sm:$0xff]
    %398 = vset.pattern.permute.xlu0 0
    %399 = vperm.xlu0 %398, %v396
    %v400 = vpop.permute.xlu0 %399
    %v402 = vadd.f32 %v395, %v400
    %404 = vrot.lane.b32.xlu0 %v402, 4
    %v405 = vpop.permute.xlu0 %404
    %vm407 = vcmask 1047584
    %408 = vst.msk [vmem:[#allocation2] sm:$0xff] %vm407, %v405
    %vm409 = vcmask 31744
    %410 = vst.msk [vmem:[#allocation2 + $0x8] sm:$0xff] %vm409, %v405
    %v411 = vld [vmem:[#allocation2] sm:$0xff]
    %v412 = vld [vmem:[#allocation2 + $0x8] sm:$0xff]
    %v413 = vld [vmem:[%s1] sm:$0x1]
    %v415 = vperm.slane %v413, 0
    %416 = vrot.lane.b32.xlu0 %v415, 3
    %v417 = vpop.permute.xlu0 %416
    %v419 = vmul.f32 %v411, %v417
    %v420 = vmul.f32 %v412, %v417
    %423 = vrot.lane.b32.xlu0 %v419, 125
    %v424 = vpop.permute.xlu0 %423
    %425 = vrot.lane.b32.xlu0 %v420, 125
    %v426 = vpop.permute.xlu0 %425
    %v427 = vsel %vm105, %v424, %v426
    %429 = vst [vmem:[#allocation3] sm:$0xff] %v427
    %v430 = vld [vmem:[#allocation2] sm:$0xff]
    %v431 = vld [vmem:[#allocation2 + $0x8] sm:$0xff]
    %v432 = vld [vmem:[%s111] sm:$0x1]
    %v434 = vperm.slane %v432, 0
    %435 = vrot.lane.b32.xlu0 %v434, 4
    %v436 = vpop.permute.xlu0 %435
    %v438 = vmul.f32 %v430, %v436
    %v439 = vmul.f32 %v431, %v436
    %442 = vrot.lane.b32.xlu0 %v438, 124
    %v443 = vpop.permute.xlu0 %442
    %444 = vrot.lane.b32.xlu0 %v439, 124
    %v445 = vpop.permute.xlu0 %444
    %v446 = vsel %vm126, %v443, %v445
    %448 = vst [vmem:[#allocation3 + $0x8] sm:$0xff] %v446
    %v449 = vld [vmem:[#allocation2] sm:$0xff]
    %v450 = vld [vmem:[#allocation2 + $0x8] sm:$0xff]
    %v451 = vld [vmem:[%s132] sm:$0x1]
    %v453 = vperm.slane %v451, 0
    %454 = vrot.lane.b32.xlu0 %v453, 5
    %v455 = vpop.permute.xlu0 %454
    %v457 = vmul.f32 %v449, %v455
    %v458 = vmul.f32 %v450, %v455
    %461 = vrot.lane.b32.xlu0 %v457, 123
    %v462 = vpop.permute.xlu0 %461
    %463 = vrot.lane.b32.xlu0 %v458, 123
    %v464 = vpop.permute.xlu0 %463
    %v465 = vsel %vm147, %v462, %v464
    %467 = vst [vmem:[#allocation3 + $0x10] sm:$0xff] %v465
    %v468 = vld [vmem:[#allocation2] sm:$0xff]
    %v469 = vld [vmem:[#allocation2 + $0x8] sm:$0xff]
    %v470 = vld [vmem:[%s153] sm:$0x1]
    %v472 = vperm.slane %v470, 0
    %473 = vrot.lane.b32.xlu0 %v472, 6
    %v474 = vpop.permute.xlu0 %473
    %v476 = vmul.f32 %v468, %v474
    %v477 = vmul.f32 %v469, %v474
    %480 = vrot.lane.b32.xlu0 %v476, 122
    %v481 = vpop.permute.xlu0 %480
    %482 = vrot.lane.b32.xlu0 %v477, 122
    %v483 = vpop.permute.xlu0 %482
    %v484 = vsel %vm168, %v481, %v483
    %486 = vst [vmem:[#allocation3 + $0x18] sm:$0xff] %v484
    %v487 = vld [vmem:[#allocation3] sm:$0xff]
    %v488 = vld [vmem:[#allocation3 + $0x8] sm:$0xff]
    %v489 = vld [vmem:[#allocation3 + $0x10] sm:$0xff]
    %v490 = vld [vmem:[#allocation3 + $0x18] sm:$0xff]
    %v491 = vld [vmem:[%s10] sm:$0xff]
    %v492 = vld [vmem:[%s11] sm:$0xff]
    %494 = vset.pattern.permute.xlu0 0
    %495 = vperm.xlu0 %494, %v492
    %v496 = vpop.permute.xlu0 %495
    %vm498 = vcmask 261120
    %v500 = vsel %vm498, %v491, 0
    %502 = vmatpush.msra.mxu0 0.0
    %503 = vmatpush.msra.mxu0 0.0
    %504 = vmatpush.msra.mxu0 0.0
    %505 = vmatpush.msra.mxu0 0.0
    %506 = vmatpush.msra.mxu0 0.0
    %507 = vmatpush.msra.mxu0 0.0
    %508 = vmatpush.msra.mxu0 0.0
    %509 = vmatpush.msra.mxu0 0.0
    %510 = vmatpush.msra.mxu0 0.0
    %511 = vmatpush.msra.mxu0 0.0
    %512 = vmatpush.msra.mxu0 0.0
    %513 = vmatpush.msra.mxu0 0.0
    %514 = vmatpush.msra.mxu0 %v490
    %515 = vmatpush.msra.mxu0 %v489
    %516 = vmatpush.msra.mxu0 %v488
    %517 = vmatpush.msra.mxu0 %v487
    %518 = vmatmul.f32.gmra.mxu0 %v500
    %v519 = vpop.f32.mrf.mxu0
    %v520 = vadd.f32 %v496, %v519
    %521 = vdwg.mxu0
    %v522 = vmax.f32 %v520, 0.0
    %523 = vadd.xlane.f32.xlu0 %v522
    %v524 = vpop.xlane.xlu0 %523
    %v525 = vmul.f32 %v524, %v216
    %v526 = vmul.f32 %v522, %v522
    %527 = vadd.xlane.f32.xlu0 %v526
    %v528 = vpop.xlane.xlu0 %527
    %v529 = vmul.f32 %v528, %v216
    %v530 = vmul.f32 %v525, %v525
    %v531 = vsub.f32 %v529, %v530
    %v532 = vsub.f32 %v522, %v525
    %v533 = vadd.f32 %v531, 1e-05
    %v534 = vrsqrt.pop %v533
    %v535 = vmul.f32 %v534, %v533
    %v536 = vmul.f32 %v535, %v534
    %v537 = vmul.f32 0.5, %v536
    %v538 = vsub.f32 1.5, %v537
    %v539 = vmul.f32 %v534, %v538
    %vm540 = vweird.f32 %v533
    %vm541 = vweird.f32 %v534
    %vm542 = vmor %vm540, %vm541
    %v543 = vsel %vm542, %v534, %v539
    %v544 = vmul.f32 %v532, %v543
    %v545 = vld [vmem:[%s12] sm:$0xff]
    %547 = vset.pattern.permute.xlu0 0
    %548 = vperm.xlu0 %547, %v545
    %v549 = vpop.permute.xlu0 %548
    %v551 = vmul.f32 %v544, %v549
    %v552 = vld [vmem:[%s13] sm:$0xff]
    %554 = vset.pattern.permute.xlu0 0
    %555 = vperm.xlu0 %554, %v552
    %v556 = vpop.permute.xlu0 %555
    %v558 = vadd.f32 %v551, %v556
    %560 = vrot.lane.b32.xlu0 %v558, 4
    %v561 = vpop.permute.xlu0 %560
    %563 = vst.msk [vmem:[#allocation2] sm:$0xff] %vm407, %v561
    %564 = vst.msk [vmem:[#allocation2 + $0x8] sm:$0xff] %vm409, %v561
    %v565 = vld [vmem:[#allocation2] sm:$0xff]
    %v566 = vld [vmem:[#allocation2 + $0x8] sm:$0xff]
    %569 = vrot.lane.b32.xlu0 %v565, 123
    %v570 = vpop.permute.xlu0 %569
    %571 = vrot.lane.b32.xlu0 %v566, 123
    %v572 = vpop.permute.xlu0 %571
    %v573 = vsel %vm147, %v570, %v572
    %v575 = vmax.f32 %v558, %v573
    %vm576 = vcmask 516096
    %577 = vst.msk [vmem:[#allocation4] sm:$0x1] %vm576, %v575
    %579 = vrot.lane.b32.xlu0 %v575, 64
    %v580 = vpop.permute.xlu0 %579
    %582 = vst.msk [vmem:[#allocation4 + $0x1] sm:$0x1] %vm576, %v580
    %v583 = vrot.slane %v575, 7
    %v584 = vrot.slane %v583, 2
    %585 = vrot.lane.b32.xlu0 %v584, 64
    %v586 = vpop.permute.xlu0 %585
    %vm588 = vcmask 1040896
    %589 = vst.msk [vmem:[#allocation4] sm:$0x1] %vm588, %v586
    %591 = vst.msk [vmem:[#allocation4 + $0x1] sm:$0x1] %vm588, %v584
    %592 = vst.sshfl [vmem:[#allocation1] sm:$0xff pattern:$0x73625140] %v575
    %s593 = scalar_lea.vmem [#allocation1], 1
    %v594 = vld [vmem:[%s593] ss:$4 sm:$0xff]
    %596 = vst.msk [vmem:[#allocation4 + $0x2] sm:$0x1] %vm576, %v594
    %597 = vst.sshfl [vmem:[#allocation1] sm:$0xff pattern:$0x73625140] %v575
    %s598 = scalar_lea.vmem [#allocation1], 1
    %v599 = vld [vmem:[%s598] ss:$4 sm:$0xff]
    %600 = vrot.lane.b32.xlu0 %v599, 64
    %v601 = vpop.permute.xlu0 %600
    %603 = vst.msk [vmem:[#allocation4 + $0x3] sm:$0x1] %vm576, %v601
    %604 = vst.sshfl [vmem:[#allocation1] sm:$0xff pattern:$0x73625140] %v575
    %s605 = scalar_lea.vmem [#allocation1], 1
    %v606 = vld [vmem:[%s605] ss:$4 sm:$0xff]
    %v607 = vrot.slane %v606, 7
    %v608 = vrot.slane %v607, 2
    %609 = vrot.lane.b32.xlu0 %v608, 64
    %v610 = vpop.permute.xlu0 %609
    %612 = vst.msk [vmem:[#allocation4 + $0x2] sm:$0x1] %vm588, %v610
    %613 = vst.sshfl [vmem:[#allocation1] sm:$0xff pattern:$0x73625140] %v575
    %s614 = scalar_lea.vmem [#allocation1], 1
    %v615 = vld [vmem:[%s614] ss:$4 sm:$0xff]
    %v616 = vrot.slane %v615, 7
    %v617 = vrot.slane %v616, 2
    %619 = vst.msk [vmem:[#allocation4 + $0x3] sm:$0x1] %vm588, %v617
    %620 = vst.sshfl [vmem:[#allocation1] sm:$0xff pattern:$0x73625140] %v575
    %s621 = scalar_lea.vmem [#allocation1], 2
    %v622 = vld [vmem:[%s621] ss:$4 sm:$0xff]
    %624 = vst.msk [vmem:[#allocation4 + $0x4] sm:$0x1] %vm576, %v622
    %625 = vst.sshfl [vmem:[#allocation1] sm:$0xff pattern:$0x73625140] %v575
    %s626 = scalar_lea.vmem [#allocation1], 2
    %v627 = vld [vmem:[%s626] ss:$4 sm:$0xff]
    %628 = vrot.lane.b32.xlu0 %v627, 64
    %v629 = vpop.permute.xlu0 %628
    %631 = vst.msk [vmem:[#allocation4 + $0x5] sm:$0x1] %vm576, %v629
    %632 = vst.sshfl [vmem:[#allocation1] sm:$0xff pattern:$0x73625140] %v575
    %s633 = scalar_lea.vmem [#allocation1], 2
    %v634 = vld [vmem:[%s633] ss:$4 sm:$0xff]
    %v635 = vrot.slane %v634, 7
    %v636 = vrot.slane %v635, 2
    %637 = vrot.lane.b32.xlu0 %v636, 64
    %v638 = vpop.permute.xlu0 %637
    %640 = vst.msk [vmem:[#allocation4 + $0x4] sm:$0x1] %vm588, %v638
    %641 = vst.sshfl [vmem:[#allocation1] sm:$0xff pattern:$0x73625140] %v575
    %s642 = scalar_lea.vmem [#allocation1], 2
    %v643 = vld [vmem:[%s642] ss:$4 sm:$0xff]
    %v644 = vrot.slane %v643, 7
    %v645 = vrot.slane %v644, 2
    %647 = vst.msk [vmem:[#allocation4 + $0x5] sm:$0x1] %vm588, %v645
    %648 = vst.sshfl [vmem:[#allocation1] sm:$0xff pattern:$0x73625140] %v575
    %s649 = scalar_lea.vmem [#allocation1], 3
    %v650 = vld [vmem:[%s649] ss:$4 sm:$0xff]
    %652 = vst.msk [vmem:[#allocation4 + $0x6] sm:$0x1] %vm576, %v650
    %653 = vst.sshfl [vmem:[#allocation1] sm:$0xff pattern:$0x73625140] %v575
    %s654 = scalar_lea.vmem [#allocation1], 3
    %v655 = vld [vmem:[%s654] ss:$4 sm:$0xff]
    %656 = vrot.lane.b32.xlu0 %v655, 64
    %v657 = vpop.permute.xlu0 %656
    %659 = vst.msk [vmem:[#allocation4 + $0x7] sm:$0x1] %vm576, %v657
    %660 = vst.sshfl [vmem:[#allocation1] sm:$0xff pattern:$0x73625140] %v575
    %s661 = scalar_lea.vmem [#allocation1], 3
    %v662 = vld [vmem:[%s661] ss:$4 sm:$0xff]
    %v663 = vrot.slane %v662, 7
    %v664 = vrot.slane %v663, 2
    %665 = vrot.lane.b32.xlu0 %v664, 64
    %v666 = vpop.permute.xlu0 %665
    %668 = vst.msk [vmem:[#allocation4 + $0x6] sm:$0x1] %vm588, %v666
    %669 = vst.sshfl [vmem:[#allocation1] sm:$0xff pattern:$0x73625140] %v575
    %s670 = scalar_lea.vmem [#allocation1], 3
    %v671 = vld [vmem:[%s670] ss:$4 sm:$0xff]
    %v672 = vrot.slane %v671, 7
    %v673 = vrot.slane %v672, 2
    %675 = vst.msk [vmem:[#allocation4 + $0x7] sm:$0x1] %vm588, %v673
    %v676 = vld [vmem:[#allocation4] sm:$0xff]
    %678 = vst [vmem:[#allocation1] ss:$4 sm:$0xff] %v676
    %v679 = vld.sshfl [vmem:[#allocation1] sm:$0xff pattern:$0x73625140]
    %v680 = vld.sshfl [vmem:[#allocation1 + $0x8] sm:$0xff pattern:$0x73625140]
    %v681 = vld.sshfl [vmem:[#allocation1 + $0x10] sm:$0xff pattern:$0x73625140]
    %v682 = vld.sshfl [vmem:[#allocation1 + $0x18] sm:$0xff pattern:$0x73625140]
    %v687 = vpack.c.bf16 %v679, %v679
    %v688 = vpack.c.bf16 %v680, %v680
    %v689 = vpack.c.bf16 %v681, %v681
    %v690 = vpack.c.bf16 %v682, %v682
    %v691 = vld [vmem:[#allocation6] sm:$0xff]
    %v692 = vld [vmem:[#allocation6 + $0x8] sm:$0xff]
    %v693 = vld [vmem:[#allocation6 + $0x10] sm:$0xff]
    %v694 = vld [vmem:[#allocation6 + $0x18] sm:$0xff]
    %v695 = vld [vmem:[#allocation6 + $0x20] sm:$0xff]
    %v696 = vld [vmem:[#allocation6 + $0x28] sm:$0xff]
    %v697 = vld [vmem:[#allocation6 + $0x30] sm:$0xff]
    %v698 = vld [vmem:[#allocation6 + $0x38] sm:$0xff]
    %v699 = vld [vmem:[#allocation6 + $0x40] sm:$0xff]
    %v700 = vld [vmem:[#allocation6 + $0x48] sm:$0xff]
    %v701 = vld [vmem:[#allocation6 + $0x50] sm:$0xff]
    %v702 = vld [vmem:[#allocation6 + $0x58] sm:$0xff]
    %v703 = vld [vmem:[#allocation6 + $0x60] sm:$0xff]
    %v704 = vld [vmem:[#allocation6 + $0x68] sm:$0xff]
    %v705 = vld [vmem:[#allocation6 + $0x70] sm:$0xff]
    %v706 = vld [vmem:[#allocation6 + $0x78] sm:$0xff]
    %v707 = vld [vmem:[#allocation6 + $0x80] sm:$0xff]
    %v708 = vld [vmem:[#allocation6 + $0x88] sm:$0xff]
    %v709 = vld [vmem:[#allocation6 + $0x90] sm:$0xff]
    %v710 = vld [vmem:[#allocation6 + $0x98] sm:$0xff]
    %v711 = vld [vmem:[#allocation6 + $0xa0] sm:$0xff]
    %v712 = vld [vmem:[#allocation6 + $0xa8] sm:$0xff]
    %v713 = vld [vmem:[#allocation6 + $0xb0] sm:$0xff]
    %v714 = vld [vmem:[#allocation6 + $0xb8] sm:$0xff]
    %v715 = vld [vmem:[#allocation6 + $0xc0] sm:$0xff]
    %v716 = vld [vmem:[#allocation6 + $0xc8] sm:$0xff]
    %v717 = vld [vmem:[#allocation6 + $0xd0] sm:$0xff]
    %v718 = vld [vmem:[#allocation6 + $0xd8] sm:$0xff]
    %v719 = vld [vmem:[#allocation6 + $0xe0] sm:$0xff]
    %v720 = vld [vmem:[#allocation6 + $0xe8] sm:$0xff]
    %v721 = vld [vmem:[#allocation6 + $0xf0] sm:$0xff]
    %v722 = vld [vmem:[#allocation6 + $0xf8] sm:$0xff]
    %v723 = vld [vmem:[#allocation6 + $0x100] sm:$0xff]
    %v724 = vld [vmem:[#allocation6 + $0x108] sm:$0xff]
    %v725 = vld [vmem:[#allocation6 + $0x110] sm:$0xff]
    %v726 = vld [vmem:[#allocation6 + $0x118] sm:$0xff]
    %v727 = vld [vmem:[#allocation6 + $0x120] sm:$0xff]
    %v728 = vld [vmem:[#allocation6 + $0x128] sm:$0xff]
    %v729 = vld [vmem:[#allocation6 + $0x130] sm:$0xff]
    %v730 = vld [vmem:[#allocation6 + $0x138] sm:$0xff]
    %v731 = vld [vmem:[#allocation6 + $0x140] sm:$0xff]
    %v732 = vld [vmem:[#allocation6 + $0x148] sm:$0xff]
    %v733 = vld [vmem:[#allocation6 + $0x150] sm:$0xff]
    %v734 = vld [vmem:[#allocation6 + $0x158] sm:$0xff]
    %v735 = vld [vmem:[#allocation6 + $0x160] sm:$0xff]
    %v736 = vld [vmem:[#allocation6 + $0x168] sm:$0xff]
    %v737 = vld [vmem:[#allocation6 + $0x170] sm:$0xff]
    %v738 = vld [vmem:[#allocation6 + $0x178] sm:$0xff]
    %v739 = vld [vmem:[#allocation6 + $0x180] sm:$0xff]
    %v740 = vld [vmem:[#allocation6 + $0x188] sm:$0xff]
    %v741 = vld [vmem:[#allocation6 + $0x190] sm:$0xff]
    %v742 = vld [vmem:[#allocation6 + $0x198] sm:$0xff]
    %v743 = vld [vmem:[#allocation6 + $0x1a0] sm:$0xff]
    %v744 = vld [vmem:[#allocation6 + $0x1a8] sm:$0xff]
    %v745 = vld [vmem:[#allocation6 + $0x1b0] sm:$0xff]
    %v746 = vld [vmem:[#allocation6 + $0x1b8] sm:$0xff]
    %v747 = vld [vmem:[#allocation6 + $0x1c0] sm:$0xff]
    %v748 = vld [vmem:[#allocation6 + $0x1c8] sm:$0xff]
    %v749 = vld [vmem:[#allocation6 + $0x1d0] sm:$0xff]
    %v750 = vld [vmem:[#allocation6 + $0x1d8] sm:$0xff]
    %v751 = vld [vmem:[#allocation6 + $0x1e0] sm:$0xff]
    %v752 = vld [vmem:[#allocation6 + $0x1e8] sm:$0xff]
    %v753 = vld [vmem:[#allocation6 + $0x1f0] sm:$0xff]
    %v754 = vld [vmem:[#allocation6 + $0x1f8] sm:$0xff]
    %v755 = vld [vmem:[#allocation6 + $0x200] sm:$0xff]
    %v756 = vld [vmem:[#allocation6 + $0x208] sm:$0xff]
    %v757 = vld [vmem:[#allocation6 + $0x210] sm:$0xff]
    %v758 = vld [vmem:[#allocation6 + $0x218] sm:$0xff]
    %v759 = vld [vmem:[#allocation6 + $0x220] sm:$0xff]
    %v760 = vld [vmem:[#allocation6 + $0x228] sm:$0xff]
    %v761 = vld [vmem:[#allocation6 + $0x230] sm:$0xff]
    %v762 = vld [vmem:[#allocation6 + $0x238] sm:$0xff]
    %v763 = vld [vmem:[#allocation6 + $0x240] sm:$0xff]
    %v764 = vld [vmem:[#allocation6 + $0x248] sm:$0xff]
    %v765 = vld [vmem:[#allocation6 + $0x250] sm:$0xff]
    %v766 = vld [vmem:[#allocation6 + $0x258] sm:$0xff]
    %v767 = vld [vmem:[#allocation6 + $0x260] sm:$0xff]
    %v768 = vld [vmem:[#allocation6 + $0x268] sm:$0xff]
    %v769 = vld [vmem:[#allocation6 + $0x270] sm:$0xff]
    %v770 = vld [vmem:[#allocation6 + $0x278] sm:$0xff]
    %v771 = vld [vmem:[#allocation6 + $0x280] sm:$0xff]
    %v772 = vld [vmem:[#allocation6 + $0x288] sm:$0xff]
    %v773 = vld [vmem:[#allocation6 + $0x290] sm:$0xff]
    %v774 = vld [vmem:[#allocation6 + $0x298] sm:$0xff]
    %v775 = vld [vmem:[#allocation6 + $0x2a0] sm:$0xff]
    %v776 = vld [vmem:[#allocation6 + $0x2a8] sm:$0xff]
    %v777 = vld [vmem:[#allocation6 + $0x2b0] sm:$0xff]
    %v778 = vld [vmem:[#allocation6 + $0x2b8] sm:$0xff]
    %v779 = vld [vmem:[#allocation6 + $0x2c0] sm:$0xff]
    %v780 = vld [vmem:[#allocation6 + $0x2c8] sm:$0xff]
    %v781 = vld [vmem:[#allocation6 + $0x2d0] sm:$0xff]
    %v782 = vld [vmem:[#allocation6 + $0x2d8] sm:$0xff]
    %v783 = vld [vmem:[#allocation6 + $0x2e0] sm:$0xff]
    %v784 = vld [vmem:[#allocation6 + $0x2e8] sm:$0xff]
    %v785 = vld [vmem:[#allocation6 + $0x2f0] sm:$0xff]
    %v786 = vld [vmem:[#allocation6 + $0x2f8] sm:$0xff]
    %v787 = vld [vmem:[#allocation6 + $0x300] sm:$0xff]
    %v788 = vld [vmem:[#allocation6 + $0x308] sm:$0xff]
    %v789 = vld [vmem:[#allocation6 + $0x310] sm:$0xff]
    %v790 = vld [vmem:[#allocation6 + $0x318] sm:$0xff]
    %v791 = vld [vmem:[#allocation6 + $0x320] sm:$0xff]
    %v792 = vld [vmem:[#allocation6 + $0x328] sm:$0xff]
    %v793 = vld [vmem:[#allocation6 + $0x330] sm:$0xff]
    %v794 = vld [vmem:[#allocation6 + $0x338] sm:$0xff]
    %v795 = vld [vmem:[#allocation6 + $0x340] sm:$0xff]
    %v796 = vld [vmem:[#allocation6 + $0x348] sm:$0xff]
    %v797 = vld [vmem:[#allocation6 + $0x350] sm:$0xff]
    %v798 = vld [vmem:[#allocation6 + $0x358] sm:$0xff]
    %v799 = vld [vmem:[#allocation6 + $0x360] sm:$0xff]
    %v800 = vld [vmem:[#allocation6 + $0x368] sm:$0xff]
    %v801 = vld [vmem:[#allocation6 + $0x370] sm:$0xff]
    %v802 = vld [vmem:[#allocation6 + $0x378] sm:$0xff]
    %v803 = vld [vmem:[#allocation6 + $0x380] sm:$0xff]
    %v804 = vld [vmem:[#allocation6 + $0x388] sm:$0xff]
    %v805 = vld [vmem:[#allocation6 + $0x390] sm:$0xff]
    %v806 = vld [vmem:[#allocation6 + $0x398] sm:$0xff]
    %v807 = vld [vmem:[#allocation6 + $0x3a0] sm:$0xff]
    %v808 = vld [vmem:[#allocation6 + $0x3a8] sm:$0xff]
    %v809 = vld [vmem:[#allocation6 + $0x3b0] sm:$0xff]
    %v810 = vld [vmem:[#allocation6 + $0x3b8] sm:$0xff]
    %v811 = vld [vmem:[#allocation6 + $0x3c0] sm:$0xff]
    %v812 = vld [vmem:[#allocation6 + $0x3c8] sm:$0xff]
    %v813 = vld [vmem:[#allocation6 + $0x3d0] sm:$0xff]
    %v814 = vld [vmem:[#allocation6 + $0x3d8] sm:$0xff]
    %v815 = vld [vmem:[#allocation6 + $0x3e0] sm:$0xff]
    %v816 = vld [vmem:[#allocation6 + $0x3e8] sm:$0xff]
    %v817 = vld [vmem:[#allocation6 + $0x3f0] sm:$0xff]
    %v818 = vld [vmem:[#allocation6 + $0x3f8] sm:$0xff]
    %v819 = vld [vmem:[%s15] sm:$0xf]
    %v821 = vperm.slane %v819, 0
    %v822 = vperm.slane %v819, 1
    %v823 = vperm.slane %v819, 2
    %v824 = vperm.slane %v819, 3
    %v957 = vunpack.c.l.b16 %v691
    %v958 = vunpack.c.h.b16 %v691
    %v959 = vunpack.c.l.b16 %v692
    %v960 = vunpack.c.h.b16 %v692
    %v961 = vunpack.c.l.b16 %v693
    %v962 = vunpack.c.h.b16 %v693
    %v963 = vunpack.c.l.b16 %v694
    %v964 = vunpack.c.h.b16 %v694
    %v965 = vunpack.c.l.b16 %v695
    %v966 = vunpack.c.h.b16 %v695
    %v967 = vunpack.c.l.b16 %v696
    %v968 = vunpack.c.h.b16 %v696
    %v969 = vunpack.c.l.b16 %v697
    %v970 = vunpack.c.h.b16 %v697
    %v971 = vunpack.c.l.b16 %v698
    %v972 = vunpack.c.h.b16 %v698
    %v973 = vunpack.c.l.b16 %v699
    %v974 = vunpack.c.h.b16 %v699
    %v975 = vunpack.c.l.b16 %v700
    %v976 = vunpack.c.h.b16 %v700
    %v977 = vunpack.c.l.b16 %v701
    %v978 = vunpack.c.h.b16 %v701
    %v979 = vunpack.c.l.b16 %v702
    %v980 = vunpack.c.h.b16 %v702
    %v981 = vunpack.c.l.b16 %v703
    %v982 = vunpack.c.h.b16 %v703
    %v983 = vunpack.c.l.b16 %v704
    %v984 = vunpack.c.h.b16 %v704
    %v985 = vunpack.c.l.b16 %v705
    %v986 = vunpack.c.h.b16 %v705
    %v987 = vunpack.c.l.b16 %v706
    %v988 = vunpack.c.h.b16 %v706
    %v989 = vunpack.c.l.b16 %v707
    %v990 = vunpack.c.h.b16 %v707
    %v991 = vunpack.c.l.b16 %v708
    %v992 = vunpack.c.h.b16 %v708
    %v993 = vunpack.c.l.b16 %v709
    %v994 = vunpack.c.h.b16 %v709
    %v995 = vunpack.c.l.b16 %v710
    %v996 = vunpack.c.h.b16 %v710
    %v997 = vunpack.c.l.b16 %v711
    %v998 = vunpack.c.h.b16 %v711
    %v999 = vunpack.c.l.b16 %v712
    %v1000 = vunpack.c.h.b16 %v712
    %v1001 = vunpack.c.l.b16 %v713
    %v1002 = vunpack.c.h.b16 %v713
    %v1003 = vunpack.c.l.b16 %v714
    %v1004 = vunpack.c.h.b16 %v714
    %v1005 = vunpack.c.l.b16 %v715
    %v1006 = vunpack.c.h.b16 %v715
    %v1007 = vunpack.c.l.b16 %v716
    %v1008 = vunpack.c.h.b16 %v716
    %v1009 = vunpack.c.l.b16 %v717
    %v1010 = vunpack.c.h.b16 %v717
    %v1011 = vunpack.c.l.b16 %v718
    %v1012 = vunpack.c.h.b16 %v718
    %v1013 = vunpack.c.l.b16 %v719
    %v1014 = vunpack.c.h.b16 %v719
    %v1015 = vunpack.c.l.b16 %v720
    %v1016 = vunpack.c.h.b16 %v720
    %v1017 = vunpack.c.l.b16 %v721
    %v1018 = vunpack.c.h.b16 %v721
    %v1019 = vunpack.c.l.b16 %v722
    %v1020 = vunpack.c.h.b16 %v722
    %v1021 = vunpack.c.l.b16 %v723
    %v1022 = vunpack.c.h.b16 %v723
    %v1023 = vunpack.c.l.b16 %v724
    %v1024 = vunpack.c.h.b16 %v724
    %v1025 = vunpack.c.l.b16 %v725
    %v1026 = vunpack.c.h.b16 %v725
    %v1027 = vunpack.c.l.b16 %v726
    %v1028 = vunpack.c.h.b16 %v726
    %v1029 = vunpack.c.l.b16 %v727
    %v1030 = vunpack.c.h.b16 %v727
    %v1031 = vunpack.c.l.b16 %v728
    %v1032 = vunpack.c.h.b16 %v728
    %v1033 = vunpack.c.l.b16 %v729
    %v1034 = vunpack.c.h.b16 %v729
    %v1035 = vunpack.c.l.b16 %v730
    %v1036 = vunpack.c.h.b16 %v730
    %v1037 = vunpack.c.l.b16 %v731
    %v1038 = vunpack.c.h.b16 %v731
    %v1039 = vunpack.c.l.b16 %v732
    %v1040 = vunpack.c.h.b16 %v732
    %v1041 = vunpack.c.l.b16 %v733
    %v1042 = vunpack.c.h.b16 %v733
    %v1043 = vunpack.c.l.b16 %v734
    %v1044 = vunpack.c.h.b16 %v734
    %v1045 = vunpack.c.l.b16 %v735
    %v1046 = vunpack.c.h.b16 %v735
    %v1047 = vunpack.c.l.b16 %v736
    %v1048 = vunpack.c.h.b16 %v736
    %v1049 = vunpack.c.l.b16 %v737
    %v1050 = vunpack.c.h.b16 %v737
    %v1051 = vunpack.c.l.b16 %v738
    %v1052 = vunpack.c.h.b16 %v738
    %v1053 = vunpack.c.l.b16 %v739
    %v1054 = vunpack.c.h.b16 %v739
    %v1055 = vunpack.c.l.b16 %v740
    %v1056 = vunpack.c.h.b16 %v740
    %v1057 = vunpack.c.l.b16 %v741
    %v1058 = vunpack.c.h.b16 %v741
    %v1059 = vunpack.c.l.b16 %v742
    %v1060 = vunpack.c.h.b16 %v742
    %v1061 = vunpack.c.l.b16 %v743
    %v1062 = vunpack.c.h.b16 %v743
    %v1063 = vunpack.c.l.b16 %v744
    %v1064 = vunpack.c.h.b16 %v744
    %v1065 = vunpack.c.l.b16 %v745
    %v1066 = vunpack.c.h.b16 %v745
    %v1067 = vunpack.c.l.b16 %v746
    %v1068 = vunpack.c.h.b16 %v746
    %v1069 = vunpack.c.l.b16 %v747
    %v1070 = vunpack.c.h.b16 %v747
    %v1071 = vunpack.c.l.b16 %v748
    %v1072 = vunpack.c.h.b16 %v748
    %v1073 = vunpack.c.l.b16 %v749
    %v1074 = vunpack.c.h.b16 %v749
    %v1075 = vunpack.c.l.b16 %v750
    %v1076 = vunpack.c.h.b16 %v750
    %v1077 = vunpack.c.l.b16 %v751
    %v1078 = vunpack.c.h.b16 %v751
    %v1079 = vunpack.c.l.b16 %v752
    %v1080 = vunpack.c.h.b16 %v752
    %v1081 = vunpack.c.l.b16 %v753
    %v1082 = vunpack.c.h.b16 %v753
    %v1083 = vunpack.c.l.b16 %v754
    %v1084 = vunpack.c.h.b16 %v754
    %v1085 = vunpack.c.l.b16 %v755
    %v1086 = vunpack.c.h.b16 %v755
    %v1087 = vunpack.c.l.b16 %v756
    %v1088 = vunpack.c.h.b16 %v756
    %v1089 = vunpack.c.l.b16 %v757
    %v1090 = vunpack.c.h.b16 %v757
    %v1091 = vunpack.c.l.b16 %v758
    %v1092 = vunpack.c.h.b16 %v758
    %v1093 = vunpack.c.l.b16 %v759
    %v1094 = vunpack.c.h.b16 %v759
    %v1095 = vunpack.c.l.b16 %v760
    %v1096 = vunpack.c.h.b16 %v760
    %v1097 = vunpack.c.l.b16 %v761
    %v1098 = vunpack.c.h.b16 %v761
    %v1099 = vunpack.c.l.b16 %v762
    %v1100 = vunpack.c.h.b16 %v762
    %v1101 = vunpack.c.l.b16 %v763
    %v1102 = vunpack.c.h.b16 %v763
    %v1103 = vunpack.c.l.b16 %v764
    %v1104 = vunpack.c.h.b16 %v764
    %v1105 = vunpack.c.l.b16 %v765
    %v1106 = vunpack.c.h.b16 %v765
    %v1107 = vunpack.c.l.b16 %v766
    %v1108 = vunpack.c.h.b16 %v766
    %v1109 = vunpack.c.l.b16 %v767
    %v1110 = vunpack.c.h.b16 %v767
    %v1111 = vunpack.c.l.b16 %v768
    %v1112 = vunpack.c.h.b16 %v768
    %v1113 = vunpack.c.l.b16 %v769
    %v1114 = vunpack.c.h.b16 %v769
    %v1115 = vunpack.c.l.b16 %v770
    %v1116 = vunpack.c.h.b16 %v770
    %v1117 = vunpack.c.l.b16 %v771
    %v1118 = vunpack.c.h.b16 %v771
    %v1119 = vunpack.c.l.b16 %v772
    %v1120 = vunpack.c.h.b16 %v772
    %v1121 = vunpack.c.l.b16 %v773
    %v1122 = vunpack.c.h.b16 %v773
    %v1123 = vunpack.c.l.b16 %v774
    %v1124 = vunpack.c.h.b16 %v774
    %v1125 = vunpack.c.l.b16 %v775
    %v1126 = vunpack.c.h.b16 %v775
    %v1127 = vunpack.c.l.b16 %v776
    %v1128 = vunpack.c.h.b16 %v776
    %v1129 = vunpack.c.l.b16 %v777
    %v1130 = vunpack.c.h.b16 %v777
    %v1131 = vunpack.c.l.b16 %v778
    %v1132 = vunpack.c.h.b16 %v778
    %v1133 = vunpack.c.l.b16 %v779
    %v1134 = vunpack.c.h.b16 %v779
    %v1135 = vunpack.c.l.b16 %v780
    %v1136 = vunpack.c.h.b16 %v780
    %v1137 = vunpack.c.l.b16 %v781
    %v1138 = vunpack.c.h.b16 %v781
    %v1139 = vunpack.c.l.b16 %v782
    %v1140 = vunpack.c.h.b16 %v782
    %v1141 = vunpack.c.l.b16 %v783
    %v1142 = vunpack.c.h.b16 %v783
    %v1143 = vunpack.c.l.b16 %v784
    %v1144 = vunpack.c.h.b16 %v784
    %v1145 = vunpack.c.l.b16 %v785
    %v1146 = vunpack.c.h.b16 %v785
    %v1147 = vunpack.c.l.b16 %v786
    %v1148 = vunpack.c.h.b16 %v786
    %v1149 = vunpack.c.l.b16 %v787
    %v1150 = vunpack.c.h.b16 %v787
    %v1151 = vunpack.c.l.b16 %v788
    %v1152 = vunpack.c.h.b16 %v788
    %v1153 = vunpack.c.l.b16 %v789
    %v1154 = vunpack.c.h.b16 %v789
    %v1155 = vunpack.c.l.b16 %v790
    %v1156 = vunpack.c.h.b16 %v790
    %v1157 = vunpack.c.l.b16 %v791
    %v1158 = vunpack.c.h.b16 %v791
    %v1159 = vunpack.c.l.b16 %v792
    %v1160 = vunpack.c.h.b16 %v792
    %v1161 = vunpack.c.l.b16 %v793
    %v1162 = vunpack.c.h.b16 %v793
    %v1163 = vunpack.c.l.b16 %v794
    %v1164 = vunpack.c.h.b16 %v794
    %v1165 = vunpack.c.l.b16 %v795
    %v1166 = vunpack.c.h.b16 %v795
    %v1167 = vunpack.c.l.b16 %v796
    %v1168 = vunpack.c.h.b16 %v796
    %v1169 = vunpack.c.l.b16 %v797
    %v1170 = vunpack.c.h.b16 %v797
    %v1171 = vunpack.c.l.b16 %v798
    %v1172 = vunpack.c.h.b16 %v798
    %v1173 = vunpack.c.l.b16 %v799
    %v1174 = vunpack.c.h.b16 %v799
    %v1175 = vunpack.c.l.b16 %v800
    %v1176 = vunpack.c.h.b16 %v800
    %v1177 = vunpack.c.l.b16 %v801
    %v1178 = vunpack.c.h.b16 %v801
    %v1179 = vunpack.c.l.b16 %v802
    %v1180 = vunpack.c.h.b16 %v802
    %v1181 = vunpack.c.l.b16 %v803
    %v1182 = vunpack.c.h.b16 %v803
    %v1183 = vunpack.c.l.b16 %v804
    %v1184 = vunpack.c.h.b16 %v804
    %v1185 = vunpack.c.l.b16 %v805
    %v1186 = vunpack.c.h.b16 %v805
    %v1187 = vunpack.c.l.b16 %v806
    %v1188 = vunpack.c.h.b16 %v806
    %v1189 = vunpack.c.l.b16 %v807
    %v1190 = vunpack.c.h.b16 %v807
    %v1191 = vunpack.c.l.b16 %v808
    %v1192 = vunpack.c.h.b16 %v808
    %v1193 = vunpack.c.l.b16 %v809
    %v1194 = vunpack.c.h.b16 %v809
    %v1195 = vunpack.c.l.b16 %v810
    %v1196 = vunpack.c.h.b16 %v810
    %v1197 = vunpack.c.l.b16 %v811
    %v1198 = vunpack.c.h.b16 %v811
    %v1199 = vunpack.c.l.b16 %v812
    %v1200 = vunpack.c.h.b16 %v812
    %v1201 = vunpack.c.l.b16 %v813
    %v1202 = vunpack.c.h.b16 %v813
    %v1203 = vunpack.c.l.b16 %v814
    %v1204 = vunpack.c.h.b16 %v814
    %v1205 = vunpack.c.l.b16 %v815
    %v1206 = vunpack.c.h.b16 %v815
    %v1207 = vunpack.c.l.b16 %v816
    %v1208 = vunpack.c.h.b16 %v816
    %v1209 = vunpack.c.l.b16 %v817
    %v1210 = vunpack.c.h.b16 %v817
    %v1211 = vunpack.c.l.b16 %v818
    %v1212 = vunpack.c.h.b16 %v818
    %v1213 = vpack.c.b16 %v961, %v957
    %v1214 = vpack.c.b16 %v962, %v958
    %v1215 = vpack.c.b16 %v963, %v959
    %v1216 = vpack.c.b16 %v964, %v960
    %v1217 = vpack.c.b16 %v969, %v965
    %v1218 = vpack.c.b16 %v970, %v966
    %v1219 = vpack.c.b16 %v971, %v967
    %v1220 = vpack.c.b16 %v972, %v968
    %v1221 = vpack.c.b16 %v977, %v973
    %v1222 = vpack.c.b16 %v978, %v974
    %v1223 = vpack.c.b16 %v979, %v975
    %v1224 = vpack.c.b16 %v980, %v976
    %v1225 = vpack.c.b16 %v985, %v981
    %v1226 = vpack.c.b16 %v986, %v982
    %v1227 = vpack.c.b16 %v987, %v983
    %v1228 = vpack.c.b16 %v988, %v984
    %v1229 = vpack.c.b16 %v993, %v989
    %v1230 = vpack.c.b16 %v994, %v990
    %v1231 = vpack.c.b16 %v995, %v991
    %v1232 = vpack.c.b16 %v996, %v992
    %v1233 = vpack.c.b16 %v1001, %v997
    %v1234 = vpack.c.b16 %v1002, %v998
    %v1235 = vpack.c.b16 %v1003, %v999
    %v1236 = vpack.c.b16 %v1004, %v1000
    %v1237 = vpack.c.b16 %v1009, %v1005
    %v1238 = vpack.c.b16 %v1010, %v1006
    %v1239 = vpack.c.b16 %v1011, %v1007
    %v1240 = vpack.c.b16 %v1012, %v1008
    %v1241 = vpack.c.b16 %v1017, %v1013
    %v1242 = vpack.c.b16 %v1018, %v1014
    %v1243 = vpack.c.b16 %v1019, %v1015
    %v1244 = vpack.c.b16 %v1020, %v1016
    %v1245 = vpack.c.b16 %v1025, %v1021
    %v1246 = vpack.c.b16 %v1026, %v1022
    %v1247 = vpack.c.b16 %v1027, %v1023
    %v1248 = vpack.c.b16 %v1028, %v1024
    %v1249 = vpack.c.b16 %v1033, %v1029
    %v1250 = vpack.c.b16 %v1034, %v1030
    %v1251 = vpack.c.b16 %v1035, %v1031
    %v1252 = vpack.c.b16 %v1036, %v1032
    %v1253 = vpack.c.b16 %v1041, %v1037
    %v1254 = vpack.c.b16 %v1042, %v1038
    %v1255 = vpack.c.b16 %v1043, %v1039
    %v1256 = vpack.c.b16 %v1044, %v1040
    %v1257 = vpack.c.b16 %v1049, %v1045
    %v1258 = vpack.c.b16 %v1050, %v1046
    %v1259 = vpack.c.b16 %v1051, %v1047
    %v1260 = vpack.c.b16 %v1052, %v1048
    %v1261 = vpack.c.b16 %v1057, %v1053
    %v1262 = vpack.c.b16 %v1058, %v1054
    %v1263 = vpack.c.b16 %v1059, %v1055
    %v1264 = vpack.c.b16 %v1060, %v1056
    %v1265 = vpack.c.b16 %v1065, %v1061
    %v1266 = vpack.c.b16 %v1066, %v1062
    %v1267 = vpack.c.b16 %v1067, %v1063
    %v1268 = vpack.c.b16 %v1068, %v1064
    %v1269 = vpack.c.b16 %v1073, %v1069
    %v1270 = vpack.c.b16 %v1074, %v1070
    %v1271 = vpack.c.b16 %v1075, %v1071
    %v1272 = vpack.c.b16 %v1076, %v1072
    %v1273 = vpack.c.b16 %v1081, %v1077
    %v1274 = vpack.c.b16 %v1082, %v1078
    %v1275 = vpack.c.b16 %v1083, %v1079
    %v1276 = vpack.c.b16 %v1084, %v1080
    %v1277 = vpack.c.b16 %v1089, %v1085
    %v1278 = vpack.c.b16 %v1090, %v1086
    %v1279 = vpack.c.b16 %v1091, %v1087
    %v1280 = vpack.c.b16 %v1092, %v1088
    %v1281 = vpack.c.b16 %v1097, %v1093
    %v1282 = vpack.c.b16 %v1098, %v1094
    %v1283 = vpack.c.b16 %v1099, %v1095
    %v1284 = vpack.c.b16 %v1100, %v1096
    %v1285 = vpack.c.b16 %v1105, %v1101
    %v1286 = vpack.c.b16 %v1106, %v1102
    %v1287 = vpack.c.b16 %v1107, %v1103
    %v1288 = vpack.c.b16 %v1108, %v1104
    %v1289 = vpack.c.b16 %v1113, %v1109
    %v1290 = vpack.c.b16 %v1114, %v1110
    %v1291 = vpack.c.b16 %v1115, %v1111
    %v1292 = vpack.c.b16 %v1116, %v1112
    %v1293 = vpack.c.b16 %v1121, %v1117
    %v1294 = vpack.c.b16 %v1122, %v1118
    %v1295 = vpack.c.b16 %v1123, %v1119
    %v1296 = vpack.c.b16 %v1124, %v1120
    %v1297 = vpack.c.b16 %v1129, %v1125
    %v1298 = vpack.c.b16 %v1130, %v1126
    %v1299 = vpack.c.b16 %v1131, %v1127
    %v1300 = vpack.c.b16 %v1132, %v1128
    %v1301 = vpack.c.b16 %v1137, %v1133
    %v1302 = vpack.c.b16 %v1138, %v1134
    %v1303 = vpack.c.b16 %v1139, %v1135
    %v1304 = vpack.c.b16 %v1140, %v1136
    %v1305 = vpack.c.b16 %v1145, %v1141
    %v1306 = vpack.c.b16 %v1146, %v1142
    %v1307 = vpack.c.b16 %v1147, %v1143
    %v1308 = vpack.c.b16 %v1148, %v1144
    %v1309 = vpack.c.b16 %v1153, %v1149
    %v1310 = vpack.c.b16 %v1154, %v1150
    %v1311 = vpack.c.b16 %v1155, %v1151
    %v1312 = vpack.c.b16 %v1156, %v1152
    %v1313 = vpack.c.b16 %v1161, %v1157
    %v1314 = vpack.c.b16 %v1162, %v1158
    %v1315 = vpack.c.b16 %v1163, %v1159
    %v1316 = vpack.c.b16 %v1164, %v1160
    %v1317 = vpack.c.b16 %v1169, %v1165
    %v1318 = vpack.c.b16 %v1170, %v1166
    %v1319 = vpack.c.b16 %v1171, %v1167
    %v1320 = vpack.c.b16 %v1172, %v1168
    %v1321 = vpack.c.b16 %v1177, %v1173
    %v1322 = vpack.c.b16 %v1178, %v1174
    %v1323 = vpack.c.b16 %v1179, %v1175
    %v1324 = vpack.c.b16 %v1180, %v1176
    %v1325 = vpack.c.b16 %v1185, %v1181
    %v1326 = vpack.c.b16 %v1186, %v1182
    %v1327 = vpack.c.b16 %v1187, %v1183
    %v1328 = vpack.c.b16 %v1188, %v1184
    %v1329 = vpack.c.b16 %v1193, %v1189
    %v1330 = vpack.c.b16 %v1194, %v1190
    %v1331 = vpack.c.b16 %v1195, %v1191
    %v1332 = vpack.c.b16 %v1196, %v1192
    %v1333 = vpack.c.b16 %v1201, %v1197
    %v1334 = vpack.c.b16 %v1202, %v1198
    %v1335 = vpack.c.b16 %v1203, %v1199
    %v1336 = vpack.c.b16 %v1204, %v1200
    %v1337 = vpack.c.b16 %v1209, %v1205
    %v1338 = vpack.c.b16 %v1210, %v1206
    %v1339 = vpack.c.b16 %v1211, %v1207
    %v1340 = vpack.c.b16 %v1212, %v1208
    %1469 = vmatpush.bf16.msra.mxu0 %v1241
    %1470 = vmatpush.bf16.msra.mxu0 %v1237
    %1471 = vmatpush.bf16.msra.mxu0 %v1233
    %1472 = vmatpush.bf16.msra.mxu0 %v1229
    %1473 = vmatpush.bf16.msra.mxu0 %v1225
    %1474 = vmatpush.bf16.msra.mxu0 %v1221
    %1475 = vmatpush.bf16.msra.mxu0 %v1217
    %1476 = vmatpush.bf16.msra.mxu0 %v1213
    %1477 = vmatmul.bf16.gmra.mxu0 %v687
    %v1478 = vpop.f32.mrf.mxu0
    %v1479 = vadd.f32 %v821, %v1478
    %v1480 = vpop.f32.mrf.mxu0
    %1481 = vdwg.mxu0
    %1482 = vmatpush.bf16.msra.mxu0 %v1273
    %1483 = vmatpush.bf16.msra.mxu0 %v1269
    %1484 = vmatpush.bf16.msra.mxu0 %v1265
    %1485 = vmatpush.bf16.msra.mxu0 %v1261
    %1486 = vmatpush.bf16.msra.mxu0 %v1257
    %1487 = vmatpush.bf16.msra.mxu0 %v1253
    %1488 = vmatpush.bf16.msra.mxu0 %v1249
    %1489 = vmatpush.bf16.msra.mxu0 %v1245
    %1490 = vmatmul.bf16.gmra.mxu0 %v688
    %v1491 = vpop.f32.mrf.mxu0
    %v1492 = vadd.f32 %v1479, %v1491
    %v1493 = vpop.f32.mrf.mxu0
    %1494 = vdwg.mxu0
    %1495 = vmatpush.bf16.msra.mxu0 %v1305
    %1496 = vmatpush.bf16.msra.mxu0 %v1301
    %1497 = vmatpush.bf16.msra.mxu0 %v1297
    %1498 = vmatpush.bf16.msra.mxu0 %v1293
    %1499 = vmatpush.bf16.msra.mxu0 %v1289
    %1500 = vmatpush.bf16.msra.mxu0 %v1285
    %1501 = vmatpush.bf16.msra.mxu0 %v1281
    %1502 = vmatpush.bf16.msra.mxu0 %v1277
    %1503 = vmatmul.bf16.gmra.mxu0 %v689
    %v1504 = vpop.f32.mrf.mxu0
    %v1505 = vadd.f32 %v1492, %v1504
    %v1506 = vpop.f32.mrf.mxu0
    %1507 = vdwg.mxu0
    %1508 = vmatpush.bf16.msra.mxu0 %v1337
    %1509 = vmatpush.bf16.msra.mxu0 %v1333
    %1510 = vmatpush.bf16.msra.mxu0 %v1329
    %1511 = vmatpush.bf16.msra.mxu0 %v1325
    %1512 = vmatpush.bf16.msra.mxu0 %v1321
    %1513 = vmatpush.bf16.msra.mxu0 %v1317
    %1514 = vmatpush.bf16.msra.mxu0 %v1313
    %1515 = vmatpush.bf16.msra.mxu0 %v1309
    %1516 = vmatmul.bf16.gmra.mxu0 %v690
    %v1517 = vpop.f32.mrf.mxu0
    %v1518 = vadd.f32 %v1505, %v1517
    %v1519 = vpop.f32.mrf.mxu0
    %1520 = vdwg.mxu0
    %1521 = vmatpush.bf16.msra.mxu0 %v1242
    %1522 = vmatpush.bf16.msra.mxu0 %v1238
    %1523 = vmatpush.bf16.msra.mxu0 %v1234
    %1524 = vmatpush.bf16.msra.mxu0 %v1230
    %1525 = vmatpush.bf16.msra.mxu0 %v1226
    %1526 = vmatpush.bf16.msra.mxu0 %v1222
    %1527 = vmatpush.bf16.msra.mxu0 %v1218
    %1528 = vmatpush.bf16.msra.mxu0 %v1214
    %1529 = vmatmul.bf16.gmra.mxu0 %v687
    %v1530 = vpop.f32.mrf.mxu0
    %v1531 = vadd.f32 %v822, %v1530
    %v1532 = vpop.f32.mrf.mxu0
    %1533 = vdwg.mxu0
    %1534 = vmatpush.bf16.msra.mxu0 %v1274
    %1535 = vmatpush.bf16.msra.mxu0 %v1270
    %1536 = vmatpush.bf16.msra.mxu0 %v1266
    %1537 = vmatpush.bf16.msra.mxu0 %v1262
    %1538 = vmatpush.bf16.msra.mxu0 %v1258
    %1539 = vmatpush.bf16.msra.mxu0 %v1254
    %1540 = vmatpush.bf16.msra.mxu0 %v1250
    %1541 = vmatpush.bf16.msra.mxu0 %v1246
    %1542 = vmatmul.bf16.gmra.mxu0 %v688
    %v1543 = vpop.f32.mrf.mxu0
    %v1544 = vadd.f32 %v1531, %v1543
    %v1545 = vpop.f32.mrf.mxu0
    %1546 = vdwg.mxu0
    %1547 = vmatpush.bf16.msra.mxu0 %v1306
    %1548 = vmatpush.bf16.msra.mxu0 %v1302
    %1549 = vmatpush.bf16.msra.mxu0 %v1298
    %1550 = vmatpush.bf16.msra.mxu0 %v1294
    %1551 = vmatpush.bf16.msra.mxu0 %v1290
    %1552 = vmatpush.bf16.msra.mxu0 %v1286
    %1553 = vmatpush.bf16.msra.mxu0 %v1282
    %1554 = vmatpush.bf16.msra.mxu0 %v1278
    %1555 = vmatmul.bf16.gmra.mxu0 %v689
    %v1556 = vpop.f32.mrf.mxu0
    %v1557 = vadd.f32 %v1544, %v1556
    %v1558 = vpop.f32.mrf.mxu0
    %1559 = vdwg.mxu0
    %1560 = vmatpush.bf16.msra.mxu0 %v1338
    %1561 = vmatpush.bf16.msra.mxu0 %v1334
    %1562 = vmatpush.bf16.msra.mxu0 %v1330
    %1563 = vmatpush.bf16.msra.mxu0 %v1326
    %1564 = vmatpush.bf16.msra.mxu0 %v1322
    %1565 = vmatpush.bf16.msra.mxu0 %v1318
    %1566 = vmatpush.bf16.msra.mxu0 %v1314
    %1567 = vmatpush.bf16.msra.mxu0 %v1310
    %1568 = vmatmul.bf16.gmra.mxu0 %v690
    %v1569 = vpop.f32.mrf.mxu0
    %v1570 = vadd.f32 %v1557, %v1569
    %v1571 = vpop.f32.mrf.mxu0
    %1572 = vdwg.mxu0
    %1573 = vmatpush.bf16.msra.mxu0 %v1243
    %1574 = vmatpush.bf16.msra.mxu0 %v1239
    %1575 = vmatpush.bf16.msra.mxu0 %v1235
    %1576 = vmatpush.bf16.msra.mxu0 %v1231
    %1577 = vmatpush.bf16.msra.mxu0 %v1227
    %1578 = vmatpush.bf16.msra.mxu0 %v1223
    %1579 = vmatpush.bf16.msra.mxu0 %v1219
    %1580 = vmatpush.bf16.msra.mxu0 %v1215
    %1581 = vmatmul.bf16.gmra.mxu0 %v687
    %v1582 = vpop.f32.mrf.mxu0
    %v1583 = vadd.f32 %v823, %v1582
    %v1584 = vpop.f32.mrf.mxu0
    %1585 = vdwg.mxu0
    %1586 = vmatpush.bf16.msra.mxu0 %v1275
    %1587 = vmatpush.bf16.msra.mxu0 %v1271
    %1588 = vmatpush.bf16.msra.mxu0 %v1267
    %1589 = vmatpush.bf16.msra.mxu0 %v1263
    %1590 = vmatpush.bf16.msra.mxu0 %v1259
    %1591 = vmatpush.bf16.msra.mxu0 %v1255
    %1592 = vmatpush.bf16.msra.mxu0 %v1251
    %1593 = vmatpush.bf16.msra.mxu0 %v1247
    %1594 = vmatmul.bf16.gmra.mxu0 %v688
    %v1595 = vpop.f32.mrf.mxu0
    %v1596 = vadd.f32 %v1583, %v1595
    %v1597 = vpop.f32.mrf.mxu0
    %1598 = vdwg.mxu0
    %1599 = vmatpush.bf16.msra.mxu0 %v1307
    %1600 = vmatpush.bf16.msra.mxu0 %v1303
    %1601 = vmatpush.bf16.msra.mxu0 %v1299
    %1602 = vmatpush.bf16.msra.mxu0 %v1295
    %1603 = vmatpush.bf16.msra.mxu0 %v1291
    %1604 = vmatpush.bf16.msra.mxu0 %v1287
    %1605 = vmatpush.bf16.msra.mxu0 %v1283
    %1606 = vmatpush.bf16.msra.mxu0 %v1279
    %1607 = vmatmul.bf16.gmra.mxu0 %v689
    %v1608 = vpop.f32.mrf.mxu0
    %v1609 = vadd.f32 %v1596, %v1608
    %v1610 = vpop.f32.mrf.mxu0
    %1611 = vdwg.mxu0
    %1612 = vmatpush.bf16.msra.mxu0 %v1339
    %1613 = vmatpush.bf16.msra.mxu0 %v1335
    %1614 = vmatpush.bf16.msra.mxu0 %v1331
    %1615 = vmatpush.bf16.msra.mxu0 %v1327
    %1616 = vmatpush.bf16.msra.mxu0 %v1323
    %1617 = vmatpush.bf16.msra.mxu0 %v1319
    %1618 = vmatpush.bf16.msra.mxu0 %v1315
    %1619 = vmatpush.bf16.msra.mxu0 %v1311
    %1620 = vmatmul.bf16.gmra.mxu0 %v690
    %v1621 = vpop.f32.mrf.mxu0
    %v1622 = vadd.f32 %v1609, %v1621
    %v1623 = vpop.f32.mrf.mxu0
    %1624 = vdwg.mxu0
    %1625 = vmatpush.bf16.msra.mxu0 %v1244
    %1626 = vmatpush.bf16.msra.mxu0 %v1240
    %1627 = vmatpush.bf16.msra.mxu0 %v1236
    %1628 = vmatpush.bf16.msra.mxu0 %v1232
    %1629 = vmatpush.bf16.msra.mxu0 %v1228
    %1630 = vmatpush.bf16.msra.mxu0 %v1224
    %1631 = vmatpush.bf16.msra.mxu0 %v1220
    %1632 = vmatpush.bf16.msra.mxu0 %v1216
    %1633 = vmatmul.bf16.gmra.mxu0 %v687
    %v1634 = vpop.f32.mrf.mxu0
    %v1635 = vadd.f32 %v824, %v1634
    %v1636 = vpop.f32.mrf.mxu0
    %1637 = vdwg.mxu0
    %1638 = vmatpush.bf16.msra.mxu0 %v1276
    %1639 = vmatpush.bf16.msra.mxu0 %v1272
    %1640 = vmatpush.bf16.msra.mxu0 %v1268
    %1641 = vmatpush.bf16.msra.mxu0 %v1264
    %1642 = vmatpush.bf16.msra.mxu0 %v1260
    %1643 = vmatpush.bf16.msra.mxu0 %v1256
    %1644 = vmatpush.bf16.msra.mxu0 %v1252
    %1645 = vmatpush.bf16.msra.mxu0 %v1248
    %1646 = vmatmul.bf16.gmra.mxu0 %v688
    %v1647 = vpop.f32.mrf.mxu0
    %v1648 = vadd.f32 %v1635, %v1647
    %v1649 = vpop.f32.mrf.mxu0
    %1650 = vdwg.mxu0
    %1651 = vmatpush.bf16.msra.mxu0 %v1308
    %1652 = vmatpush.bf16.msra.mxu0 %v1304
    %1653 = vmatpush.bf16.msra.mxu0 %v1300
    %1654 = vmatpush.bf16.msra.mxu0 %v1296
    %1655 = vmatpush.bf16.msra.mxu0 %v1292
    %1656 = vmatpush.bf16.msra.mxu0 %v1288
    %1657 = vmatpush.bf16.msra.mxu0 %v1284
    %1658 = vmatpush.bf16.msra.mxu0 %v1280
    %1659 = vmatmul.bf16.gmra.mxu0 %v689
    %v1660 = vpop.f32.mrf.mxu0
    %v1661 = vadd.f32 %v1648, %v1660
    %v1662 = vpop.f32.mrf.mxu0
    %1663 = vdwg.mxu0
    %1664 = vmatpush.bf16.msra.mxu0 %v1340
    %1665 = vmatpush.bf16.msra.mxu0 %v1336
    %1666 = vmatpush.bf16.msra.mxu0 %v1332
    %1667 = vmatpush.bf16.msra.mxu0 %v1328
    %1668 = vmatpush.bf16.msra.mxu0 %v1324
    %1669 = vmatpush.bf16.msra.mxu0 %v1320
    %1670 = vmatpush.bf16.msra.mxu0 %v1316
    %1671 = vmatpush.bf16.msra.mxu0 %v1312
    %1672 = vmatmul.bf16.gmra.mxu0 %v690
    %v1673 = vpop.f32.mrf.mxu0
    %v1674 = vadd.f32 %v1661, %v1673
    %v1675 = vpop.f32.mrf.mxu0
    %1676 = vdwg.mxu0
    %v1677 = vmax.f32 %v1518, 0.0
    %v1678 = vmax.f32 %v1570, 0.0
    %v1679 = vmax.f32 %v1622, 0.0
    %v1680 = vmax.f32 %v1674, 0.0
    %v1681 = vld [vmem:[%s16] sm:$0xf]
    %v1683 = vperm.slane %v1681, 0
    %v1684 = vperm.slane %v1681, 1
    %v1685 = vperm.slane %v1681, 2
    %v1686 = vperm.slane %v1681, 3
    %v1691 = vmul.f32 %v1677, %v1683
    %v1692 = vmul.f32 %v1678, %v1684
    %v1693 = vmul.f32 %v1679, %v1685
    %v1694 = vmul.f32 %v1680, %v1686
    %vm1695 = vcmask 1041408
    %v1696 = vsel %vm1695, %v1691, 0.0
    %v1697 = vsel %vm1695, %v1692, 0.0
    %v1698 = vadd.f32 %v1696, %v1697
    %v1699 = vsel %vm1695, %v1693, 0.0
    %v1700 = vadd.f32 %v1698, %v1699
    %v1701 = vsel %vm1695, %v1694, 0.0
    %v1702 = vadd.f32 %v1700, %v1701
    %1703 = vadd.xlane.f32.xlu0 %v1702
    %v1704 = vpop.xlane.xlu0 %1703
    %v1705 = vld [vmem:[#allocation5] sm:$0x1]
    %v1707 = vperm.slane %v1705, 0
    %v1709 = vadd.f32 %v1704, %v1707
    %vm1710 = vcmask 1024
    %1711 = vst.msk [vmem:[%s18] sm:$0x3] %vm1710, %v1709
    // Predicated region
    $region78: #{tpu_custom_call.1} parent=1 // pred_check
      _
    $region79: #{tpu_custom_call.1} parent=1 // pred_check_branch
      %1713 = sbr.rel (0) target = $region81
    $region80: #{tpu_custom_call.1} parent=1 // pred_region
      _
    $region81: #{tpu_custom_call.1} parent=1 // pred_fallthru
      _
    // Predicated region
    $region82: #{tpu_custom_call.1} parent=1 // pred_check
      _
    $region83: #{tpu_custom_call.1} parent=1 // pred_check_branch
      %1715 = sbr.rel (0) target = $region85
    $region84: #{tpu_custom_call.1} parent=1 // pred_region
      _
    $region85: #{tpu_custom_call.1} parent=1 // pred_fallthru
      _
    %1716 = vsyncpa [#allocation7], 1

</llo_original>
